<compile_context>
chip_gen: v7x
topology: tpu7x:2x2x1
jax: 0.10.0
libtpu: 0.0.40
codegen_flags: <defaults>
</compile_context>

<pallas_src>
import jax
import jax.numpy as jnp
from jax import lax
from jax.experimental import pallas as pl
from jax.experimental.pallas import tpu as pltpu

BN_EPS = 1e-5
PAD = 128  # lane-dense feature width (exactly one MXU tile on all generations)


# ----------------------------- fused kernel ---------------------------------
def fused_gin_kernel(adj_ref, h_ref, w1_ref, b1_ref, w2_ref, b2_ref,
                     wp_ref, bp_ref, out_ref, hpad_ref, pool_ref):
    """One graph per grid step; the entire forward stays in VMEM/vregs.

    adj_ref : [1, N, N]        bf16 adjacency (0/1, no self loops)
    h_ref   : [1, N, D_in]     unpadded input node features (f32)
    w1/w2   : [L, P, P]        MLP weights with eval BatchNorm folded in
    b1/b2   : [L, 1, P]        folded BatchNorm biases
    wp_ref  : [(L+1)*P, P]     flattened prediction-head weights
    bp_ref  : [1, P]           pre-summed prediction-head biases
    out_ref : [1, 1, P]        per-graph summed score (padded lanes zero)
    hpad_ref: [N, P]  scratch  lane-dense padded features
    pool_ref: [1, (L+1)*P] scratch  packed pooled rows for the deferred heads
    """
    n_layers = w1_ref.shape[0]
    n_nodes = h_ref.shape[1]
    d_in = h_ref.shape[2]
    pad = w1_ref.shape[-1]

    # bf16 adjacency (exact for 0/1) -> f32 for the f32 compute pipeline
    adj = adj_ref[0].astype(jnp.float32)                                # [N, N]

    # zero-pad input features to lane-dense width inside VMEM
    # (full re-zero every step: scratch persists per-core across grid steps)
    hpad_ref[...] = jnp.zeros((n_nodes, pad), jnp.float32)
    hpad_ref[:, :d_in] = h_ref[0]
    h = hpad_ref[...]                                                   # [N, P]

    # head 0: max-pool of raw (padded) input features, head matmul deferred
    pool_ref[:, 0:pad] = jnp.max(h, axis=0, keepdims=True)

    for l in range(n_layers):  # static unroll
        # GINConv (eps=0, sum aggregation); self-term is a VALU add under MXU slack
        h_agg = h + jnp.dot(adj, h, preferred_element_type=jnp.float32)
        # MLP linear 1 (+ folded BN) + ReLU
        z = jnp.dot(h_agg, w1_ref[l], preferred_element_type=jnp.float32) + b1_ref[l]
        z = jnp.maximum(z, 0.0)
        # MLP linear 2 (+ folded outer BN) + ReLU
        h = jnp.dot(z, w2_ref[l], preferred_element_type=jnp.float32) + b2_ref[l]
        h = jnp.maximum(h, 0.0)
        # max-pool readout; Dropout = identity (eval); head matmul deferred
        pool_ref[:, (l + 1) * pad:(l + 2) * pad] = jnp.max(h, axis=0, keepdims=True)

    # single deferred prediction-head matmul: [1, (L+1)*P] x [(L+1)*P, P]
    score = jnp.dot(pool_ref[...], wp_ref[...],
                    preferred_element_type=jnp.float32) + bp_ref[...]
    out_ref[0] = score


# ----------------------------- parameter prep --------------------------------
def _pad2(x, rows, cols):
    r, c = x.shape
    return jnp.pad(x, ((0, rows - r), (0, cols - c)))


def prepare_packed_params(params, pad=PAD):
    """Fold eval BatchNorms into the bias-free Linears, zero-pad to `pad` lanes,
    stack per-layer tensors, and flatten the prediction heads for the deferred
    single head matmul."""
    w1s, b1s, w2s, b2s = [], [], [], []
    for p in params["gin_layers"]:
        s1 = p["mbn_g"] * lax.rsqrt(p["mbn_v"] + BN_EPS)          # [1, H]
        w1 = p["w1"] * s1
        b1 = p["mbn_b"] - p["mbn_m"] * s1
        s2 = p["obn_g"] * lax.rsqrt(p["obn_v"] + BN_EPS)
        w2 = p["w2"] * s2
        b2 = p["obn_b"] - p["obn_m"] * s2
        w1s.append(_pad2(w1, pad, pad)); b1s.append(_pad2(b1, 1, pad))
        w2s.append(_pad2(w2, pad, pad)); b2s.append(_pad2(b2, 1, pad))
    wps, bps = [], []
    for wp, bp in params["pred_heads"]:
        wps.append(_pad2(wp, pad, pad))
        bps.append(_pad2(bp, 1, pad))
    wp_flat = jnp.concatenate(wps, axis=0)                # [(L+1)*pad, pad]
    bp_sum = jnp.sum(jnp.stack(bps), axis=0)              # [1, pad]
    return dict(w1=jnp.stack(w1s), b1=jnp.stack(b1s),
                w2=jnp.stack(w2s), b2=jnp.stack(b2s),
                wp=wp_flat, bp=bp_sum)


# ----------------------------- wrapper ---------------------------------------
def _vmem_limit_bytes():
    # ~75% of physical VMEM: v7x 64 MiB -> 48 MiB, v5e/v6e 128 MiB -> 96 MiB.
    try:
        cap = int(pltpu.get_tpu_info().vmem_capacity_bytes)
    except Exception:  # fall back to a generation-safe value
        cap = 64 << 20
    return max(32 << 20, min(cap * 3 // 4, 100 << 20))


def gin_maxpooling_forward(adj_batch, h_batch, packed, output_dim, pad=PAD):
    """adj_batch: [G, N, N] (0/1, no self loops); h_batch: [G, N, D_in]."""
    G, N, d_in = h_batch.shape
    L = packed["w1"].shape[0]

    adj_bf16 = adj_batch.astype(jnp.bfloat16)   # exact for 0/1; halves N^2 traffic
    h_f32 = h_batch.astype(jnp.float32)

    args = (adj_bf16, h_f32,
            packed["w1"], packed["b1"], packed["w2"], packed["b2"],
            packed["wp"], packed["bp"])

    flops_per_graph = (L * 2 * N * N * pad          # aggregation matmuls
                       + L * 2 * 2 * N * pad * pad  # MLP matmuls
                       + 2 * (L + 1) * pad * pad)   # deferred head matmul
    bytes_accessed = (adj_bf16.size * 2 + h_f32.size * 4
                      + sum(int(packed[k].size) * 4
                            for k in ("w1", "b1", "w2", "b2", "wp", "bp"))
                      + G * pad * 4)
    cost = pl.CostEstimate(flops=G * flops_per_graph, transcendentals=0,
                           bytes_accessed=bytes_accessed)

    grid_spec = pltpu.PrefetchScalarGridSpec(
        num_scalar_prefetch=0,
        grid=(G,),  # one graph per step; "parallel" -> both TCs on v7x
        in_specs=[
            pl.BlockSpec((1, N, N), lambda g: (g, 0, 0)),        # adjacency (bf16)
            pl.BlockSpec((1, N, d_in), lambda g: (g, 0, 0)),     # node features
            # weights: constant block index -> DMA'd once, VMEM-resident
            pl.BlockSpec(packed["w1"].shape, lambda g: (0, 0, 0)),
            pl.BlockSpec(packed["b1"].shape, lambda g: (0, 0, 0)),
            pl.BlockSpec(packed["w2"].shape, lambda g: (0, 0, 0)),
            pl.BlockSpec(packed["b2"].shape, lambda g: (0, 0, 0)),
            pl.BlockSpec(packed["wp"].shape, lambda g: (0, 0)),
            pl.BlockSpec(packed["bp"].shape, lambda g: (0, 0)),
        ],
        out_specs=pl.BlockSpec((1, 1, pad), lambda g: (g, 0, 0)),
        scratch_shapes=[
            pltpu.VMEM((N, pad), jnp.float32),          # padded feature buffer
            pltpu.VMEM((1, (L + 1) * pad), jnp.float32) # packed pooled rows
        ],
    )

    out = pl.pallas_call(
        fused_gin_kernel,
        out_shape=jax.ShapeDtypeStruct((G, 1, pad), jnp.float32),
        grid_spec=grid_spec,
        compiler_params=pltpu.CompilerParams(
            dimension_semantics=("parallel",),
            vmem_limit_bytes=_vmem_limit_bytes()),
        cost_estimate=cost,
    )(*args)
    return out[:, 0, :output_dim]


# ---------------- pure-JAX reference (unfolded, unpadded, per graph) ----------
def reference_forward(adj, h, params):
    def bn_relu(z, g, b, m, v):
        return jnp.maximum((z - m) * lax.rsqrt(v + BN_EPS) * g + b, 0.0)

    hidden_rep = [h]
    for p in params["gin_layers"]:
        hagg = h + adj @ h
        z = hagg @ p["w1"]
        z = bn_relu(z, p["mbn_g"], p["mbn_b"], p["mbn_m"], p["mbn_v"])
        z = z @ p["w2"]
        h = bn_relu(z, p["obn_g"], p["obn_b"], p["obn_m"], p["obn_v"])
        hidden_rep.append(h)
    score = jnp.zeros((1, params["output_dim"]), jnp.float32)
    for hr, (wp, bp) in zip(hidden_rep, params["pred_heads"]):
        score = score + (jnp.max(hr, axis=0, keepdims=True) @ wp + bp)
    return score


# ---------------- deterministic parameter init -------------------------------
def init_params(key, input_dim, hidden_dim, output_dim, num_layers=5):
    def bn_params(k, dim):
        k1, k2, k3, k4 = jax.random.split(k, 4)
        return dict(
            g=(1.0 + 0.1 * jax.random.normal(k1, (1, dim))).astype(jnp.float32),
            b=(0.1 * jax.random.normal(k2, (1, dim))).astype(jnp.float32),
            m=(0.1 * jax.random.normal(k3, (1, dim))).astype(jnp.float32),
            v=jax.random.uniform(k4, (1, dim), minval=0.5, maxval=1.5).astype(jnp.float32),
        )

    gin_layers = []
    for layer in range(num_layers - 1):
        d_in = input_dim if layer == 0 else hidden_dim
        key, k1, k2, k3, k4 = jax.random.split(key, 5)
        # PyTorch nn.Linear weight is [out, in]; store transposed [in, out].
        w1 = (jax.random.normal(k1, (hidden_dim, d_in)) * (1.0 / jnp.sqrt(d_in))).T
        w2 = (jax.random.normal(k2, (hidden_dim, hidden_dim)) * (1.0 / jnp.sqrt(hidden_dim))).T
        mbn = bn_params(k3, hidden_dim)
        obn = bn_params(k4, hidden_dim)
        gin_layers.append(dict(
            w1=w1.astype(jnp.float32), w2=w2.astype(jnp.float32),
            mbn_g=mbn["g"], mbn_b=mbn["b"], mbn_m=mbn["m"], mbn_v=mbn["v"],
            obn_g=obn["g"], obn_b=obn["b"], obn_m=obn["m"], obn_v=obn["v"],
        ))

    pred_heads = []
    for layer in range(num_layers):
        d_in = input_dim if layer == 0 else hidden_dim
        key, k1, k2 = jax.random.split(key, 3)
        wp = (jax.random.normal(k1, (output_dim, d_in)) * (1.0 / jnp.sqrt(d_in))).T
        bp = 0.1 * jax.random.normal(k2, (1, output_dim))
        pred_heads.append((wp.astype(jnp.float32), bp.astype(jnp.float32)))

    return dict(gin_layers=gin_layers, pred_heads=pred_heads, output_dim=output_dim)


if __name__ == "__main__":
    G, N, INPUT_DIM, HIDDEN_DIM, OUTPUT_DIM = 8, 16, 8, 32, 4

    key = jax.random.PRNGKey(0)
    key, k_adj, k_h, k_p = jax.random.split(key, 4)

    # batch of random undirected graphs (dense adjacency, no self loops)
    upper = jax.random.bernoulli(k_adj, 0.3, (G, N, N))
    adj = jnp.logical_or(upper, jnp.swapaxes(upper, -1, -2))
    adj = jnp.where(jnp.eye(N, dtype=bool)[None], False, adj).astype(jnp.float32)

    h = jax.random.normal(k_h, (G, N, INPUT_DIM), dtype=jnp.float32)
    params = init_params(k_p, INPUT_DIM, HIDDEN_DIM, OUTPUT_DIM)

    # one-time static parameter prep (BN fold + lane padding + stacking + head flatten)
    packed = prepare_packed_params(params)

    out = gin_maxpooling_forward(adj, h, packed, OUTPUT_DIM)
    out = jax.block_until_ready(out)

    ref = jnp.concatenate([reference_forward(adj[g], h[g], params) for g in range(G)], axis=0)
    assert out.shape == (G, OUTPUT_DIM)
    assert jnp.allclose(out, ref, rtol=1e-4, atol=1e-4), (out, ref)

    print("KERNEL_OK")
</pallas_src>

<mosaic_0001>
module attributes {stable_mosaic.version = 11 : i64} {
  func.func @fused_gin_kernel(%arg0: i32, %arg1: memref<1x16x16xbf16, #tpu.memory_space<vmem>>, %arg2: memref<1x16x8xf32, #tpu.memory_space<vmem>>, %arg3: memref<4x128x128xf32, #tpu.memory_space<vmem>>, %arg4: memref<4x1x128xf32, #tpu.memory_space<vmem>>, %arg5: memref<4x128x128xf32, #tpu.memory_space<vmem>>, %arg6: memref<4x1x128xf32, #tpu.memory_space<vmem>>, %arg7: memref<640x128xf32, #tpu.memory_space<vmem>>, %arg8: memref<1x128xf32, #tpu.memory_space<vmem>>, %arg9: memref<1x1x128xf32, #tpu.memory_space<vmem>>, %arg10: memref<16x128xf32, #tpu.memory_space<vmem>>, %arg11: memref<1x640xf32, #tpu.memory_space<vmem>>) attributes {dimension_semantics = [#tpu.dimension_semantics<parallel>], iteration_bounds = array<i64: 8>, scalar_prefetch = 0 : i64, scratch_operands = 2 : i64, tpu.core_type = #tpu.core_type<tc>, window_params = [{transform_indices = @transform_0, window_bounds = array<i64: 1, 16, 16>}, {transform_indices = @transform_1, window_bounds = array<i64: 1, 16, 8>}, {pipeline_mode = #tpu.pipeline_mode<synchronous>, transform_indices = @transform_2, window_bounds = array<i64: 4, 128, 128>}, {pipeline_mode = #tpu.pipeline_mode<synchronous>, transform_indices = @transform_3, window_bounds = array<i64: 4, 1, 128>}, {pipeline_mode = #tpu.pipeline_mode<synchronous>, transform_indices = @transform_4, window_bounds = array<i64: 4, 128, 128>}, {pipeline_mode = #tpu.pipeline_mode<synchronous>, transform_indices = @transform_5, window_bounds = array<i64: 4, 1, 128>}, {pipeline_mode = #tpu.pipeline_mode<synchronous>, transform_indices = @transform_6, window_bounds = array<i64: 640, 128>}, {pipeline_mode = #tpu.pipeline_mode<synchronous>, transform_indices = @transform_7, window_bounds = array<i64: 1, 128>}, {transform_indices = @transform_8, window_bounds = array<i64: 1, 1, 128>}]} {
    %c0 = arith.constant 0 : index
    %c0_0 = arith.constant 0 : index
    %c0_1 = arith.constant 0 : index
    %0 = vector.load %arg1[%c0, %c0_0, %c0_1] : memref<1x16x16xbf16, #tpu.memory_space<vmem>>, vector<1x16x16xbf16>
    %1 = vector.shape_cast %0 : vector<1x16x16xbf16> to vector<16x16xbf16>
    %2 = arith.extf %1 : vector<16x16xbf16> to vector<16x16xf32>
    %cst = arith.constant 0.000000e+00 : f32
    %3 = vector.broadcast %cst : f32 to vector<16x128xf32>
    %c0_2 = arith.constant 0 : index
    %c0_3 = arith.constant 0 : index
    %4 = vector.load %arg10[%c0_2, %c0_3] : memref<16x128xf32, #tpu.memory_space<vmem>>, vector<16x128xf32>
    tpu.vector_store %arg10[%c0_2, %c0_3], %3 {strides = array<i32>} : memref<16x128xf32, #tpu.memory_space<vmem>>, vector<16x128xf32>,
    %c0_4 = arith.constant 0 : index
    %c0_5 = arith.constant 0 : index
    %c0_6 = arith.constant 0 : index
    %5 = vector.load %arg2[%c0_4, %c0_5, %c0_6] : memref<1x16x8xf32, #tpu.memory_space<vmem>>, vector<1x16x8xf32>
    %6 = vector.shape_cast %5 : vector<1x16x8xf32> to vector<16x8xf32>
    %c0_7 = arith.constant 0 : index
    %c0_8 = arith.constant 0 : index
    %7 = vector.load %arg10[%c0_7, %c0_8] : memref<16x128xf32, #tpu.memory_space<vmem>>, vector<16x8xf32>
    tpu.vector_store %arg10[%c0_7, %c0_8], %6 {strides = array<i32>} : memref<16x128xf32, #tpu.memory_space<vmem>>, vector<16x8xf32>,
    %c0_9 = arith.constant 0 : index
    %c0_10 = arith.constant 0 : index
    %8 = vector.load %arg10[%c0_9, %c0_10] : memref<16x128xf32, #tpu.memory_space<vmem>>, vector<16x128xf32>
    %cst_11 = arith.constant dense<0xFF800000> : vector<128xf32>
    %9 = vector.multi_reduction <maximumf>, %8, %cst_11 [0] : vector<16x128xf32> to vector<128xf32>
    %10 = vector.shape_cast %9 : vector<128xf32> to vector<1x128xf32>
    %c0_12 = arith.constant 0 : index
    %c0_13 = arith.constant 0 : index
    %11 = vector.load %arg11[%c0_12, %c0_13] : memref<1x640xf32, #tpu.memory_space<vmem>>, vector<1x128xf32>
    tpu.vector_store %arg11[%c0_12, %c0_13], %10 {strides = array<i32>} : memref<1x640xf32, #tpu.memory_space<vmem>>, vector<1x128xf32>,
    %cst_14 = arith.constant dense<0.000000e+00> : vector<16x128xf32>
    %12 = tpu.matmul %2, %8, %cst_14 {dimension_numbers = #tpu.dot_dimension_numbers<[1], [0], [0], [1], [0, 0, 1, 1], [], []>} : vector<16x16xf32>, vector<16x128xf32>, vector<16x128xf32> -> vector<16x128xf32>
    %13 = arith.addf %8, %12 : vector<16x128xf32>
    %c0_15 = arith.constant 0 : index
    %c0_16 = arith.constant 0 : index
    %c0_17 = arith.constant 0 : index
    %14 = vector.load %arg3[%c0_15, %c0_16, %c0_17] : memref<4x128x128xf32, #tpu.memory_space<vmem>>, vector<1x128x128xf32>
    %15 = vector.shape_cast %14 : vector<1x128x128xf32> to vector<128x128xf32>
    %cst_18 = arith.constant dense<0.000000e+00> : vector<16x128xf32>
    %16 = tpu.matmul %13, %15, %cst_18 {dimension_numbers = #tpu.dot_dimension_numbers<[1], [0], [0], [1], [0, 0, 1, 1], [], []>} : vector<16x128xf32>, vector<128x128xf32>, vector<16x128xf32> -> vector<16x128xf32>
    %c0_19 = arith.constant 0 : index
    %c0_20 = arith.constant 0 : index
    %c0_21 = arith.constant 0 : index
    %17 = vector.load %arg4[%c0_19, %c0_20, %c0_21] : memref<4x1x128xf32, #tpu.memory_space<vmem>>, vector<1x1x128xf32>
    %18 = vector.shape_cast %17 : vector<1x1x128xf32> to vector<1x128xf32>
    %19 = vector.broadcast %18 : vector<1x128xf32> to vector<16x128xf32>
    %20 = arith.addf %16, %19 : vector<16x128xf32>
    %cst_22 = arith.constant 0.000000e+00 : f32
    %21 = vector.broadcast %cst_22 : f32 to vector<16x128xf32>
    %22 = arith.maximumf %20, %21 : vector<16x128xf32>
    %c0_23 = arith.constant 0 : index
    %c0_24 = arith.constant 0 : index
    %c0_25 = arith.constant 0 : index
    %23 = vector.load %arg5[%c0_23, %c0_24, %c0_25] : memref<4x128x128xf32, #tpu.memory_space<vmem>>, vector<1x128x128xf32>
    %24 = vector.shape_cast %23 : vector<1x128x128xf32> to vector<128x128xf32>
    %cst_26 = arith.constant dense<0.000000e+00> : vector<16x128xf32>
    %25 = tpu.matmul %22, %24, %cst_26 {dimension_numbers = #tpu.dot_dimension_numbers<[1], [0], [0], [1], [0, 0, 1, 1], [], []>} : vector<16x128xf32>, vector<128x128xf32>, vector<16x128xf32> -> vector<16x128xf32>
    %c0_27 = arith.constant 0 : index
    %c0_28 = arith.constant 0 : index
    %c0_29 = arith.constant 0 : index
    %26 = vector.load %arg6[%c0_27, %c0_28, %c0_29] : memref<4x1x128xf32, #tpu.memory_space<vmem>>, vector<1x1x128xf32>
    %27 = vector.shape_cast %26 : vector<1x1x128xf32> to vector<1x128xf32>
    %28 = vector.broadcast %27 : vector<1x128xf32> to vector<16x128xf32>
    %29 = arith.addf %25, %28 : vector<16x128xf32>
    %cst_30 = arith.constant 0.000000e+00 : f32
    %30 = vector.broadcast %cst_30 : f32 to vector<16x128xf32>
    %31 = arith.maximumf %29, %30 : vector<16x128xf32>
    %cst_31 = arith.constant dense<0xFF800000> : vector<128xf32>
    %32 = vector.multi_reduction <maximumf>, %31, %cst_31 [0] : vector<16x128xf32> to vector<128xf32>
    %33 = vector.shape_cast %32 : vector<128xf32> to vector<1x128xf32>
    %c0_32 = arith.constant 0 : index
    %c128 = arith.constant 128 : index
    %34 = vector.load %arg11[%c0_32, %c128] : memref<1x640xf32, #tpu.memory_space<vmem>>, vector<1x128xf32>
    tpu.vector_store %arg11[%c0_32, %c128], %33 {strides = array<i32>} : memref<1x640xf32, #tpu.memory_space<vmem>>, vector<1x128xf32>,
    %cst_33 = arith.constant dense<0.000000e+00> : vector<16x128xf32>
    %35 = tpu.matmul %2, %31, %cst_33 {dimension_numbers = #tpu.dot_dimension_numbers<[1], [0], [0], [1], [0, 0, 1, 1], [], []>} : vector<16x16xf32>, vector<16x128xf32>, vector<16x128xf32> -> vector<16x128xf32>
    %36 = arith.addf %31, %35 : vector<16x128xf32>
    %c1 = arith.constant 1 : index
    %c0_34 = arith.constant 0 : index
    %c0_35 = arith.constant 0 : index
    %37 = vector.load %arg3[%c1, %c0_34, %c0_35] : memref<4x128x128xf32, #tpu.memory_space<vmem>>, vector<1x128x128xf32>
    %38 = vector.shape_cast %37 : vector<1x128x128xf32> to vector<128x128xf32>
    %cst_36 = arith.constant dense<0.000000e+00> : vector<16x128xf32>
    %39 = tpu.matmul %36, %38, %cst_36 {dimension_numbers = #tpu.dot_dimension_numbers<[1], [0], [0], [1], [0, 0, 1, 1], [], []>} : vector<16x128xf32>, vector<128x128xf32>, vector<16x128xf32> -> vector<16x128xf32>
    %c1_37 = arith.constant 1 : index
    %c0_38 = arith.constant 0 : index
    %c0_39 = arith.constant 0 : index
    %40 = vector.load %arg4[%c1_37, %c0_38, %c0_39] : memref<4x1x128xf32, #tpu.memory_space<vmem>>, vector<1x1x128xf32>
    %41 = vector.shape_cast %40 : vector<1x1x128xf32> to vector<1x128xf32>
    %42 = vector.broadcast %41 : vector<1x128xf32> to vector<16x128xf32>
    %43 = arith.addf %39, %42 : vector<16x128xf32>
    %cst_40 = arith.constant 0.000000e+00 : f32
    %44 = vector.broadcast %cst_40 : f32 to vector<16x128xf32>
    %45 = arith.maximumf %43, %44 : vector<16x128xf32>
    %c1_41 = arith.constant 1 : index
    %c0_42 = arith.constant 0 : index
    %c0_43 = arith.constant 0 : index
    %46 = vector.load %arg5[%c1_41, %c0_42, %c0_43] : memref<4x128x128xf32, #tpu.memory_space<vmem>>, vector<1x128x128xf32>
    %47 = vector.shape_cast %46 : vector<1x128x128xf32> to vector<128x128xf32>
    %cst_44 = arith.constant dense<0.000000e+00> : vector<16x128xf32>
    %48 = tpu.matmul %45, %47, %cst_44 {dimension_numbers = #tpu.dot_dimension_numbers<[1], [0], [0], [1], [0, 0, 1, 1], [], []>} : vector<16x128xf32>, vector<128x128xf32>, vector<16x128xf32> -> vector<16x128xf32>
    %c1_45 = arith.constant 1 : index
    %c0_46 = arith.constant 0 : index
    %c0_47 = arith.constant 0 : index
    %49 = vector.load %arg6[%c1_45, %c0_46, %c0_47] : memref<4x1x128xf32, #tpu.memory_space<vmem>>, vector<1x1x128xf32>
    %50 = vector.shape_cast %49 : vector<1x1x128xf32> to vector<1x128xf32>
    %51 = vector.broadcast %50 : vector<1x128xf32> to vector<16x128xf32>
    %52 = arith.addf %48, %51 : vector<16x128xf32>
    %cst_48 = arith.constant 0.000000e+00 : f32
    %53 = vector.broadcast %cst_48 : f32 to vector<16x128xf32>
    %54 = arith.maximumf %52, %53 : vector<16x128xf32>
    %cst_49 = arith.constant dense<0xFF800000> : vector<128xf32>
    %55 = vector.multi_reduction <maximumf>, %54, %cst_49 [0] : vector<16x128xf32> to vector<128xf32>
    %56 = vector.shape_cast %55 : vector<128xf32> to vector<1x128xf32>
    %c0_50 = arith.constant 0 : index
    %c256 = arith.constant 256 : index
    %57 = vector.load %arg11[%c0_50, %c256] : memref<1x640xf32, #tpu.memory_space<vmem>>, vector<1x128xf32>
    tpu.vector_store %arg11[%c0_50, %c256], %56 {strides = array<i32>} : memref<1x640xf32, #tpu.memory_space<vmem>>, vector<1x128xf32>,
    %cst_51 = arith.constant dense<0.000000e+00> : vector<16x128xf32>
    %58 = tpu.matmul %2, %54, %cst_51 {dimension_numbers = #tpu.dot_dimension_numbers<[1], [0], [0], [1], [0, 0, 1, 1], [], []>} : vector<16x16xf32>, vector<16x128xf32>, vector<16x128xf32> -> vector<16x128xf32>
    %59 = arith.addf %54, %58 : vector<16x128xf32>
    %c2 = arith.constant 2 : index
    %c0_52 = arith.constant 0 : index
    %c0_53 = arith.constant 0 : index
    %60 = vector.load %arg3[%c2, %c0_52, %c0_53] : memref<4x128x128xf32, #tpu.memory_space<vmem>>, vector<1x128x128xf32>
    %61 = vector.shape_cast %60 : vector<1x128x128xf32> to vector<128x128xf32>
    %cst_54 = arith.constant dense<0.000000e+00> : vector<16x128xf32>
    %62 = tpu.matmul %59, %61, %cst_54 {dimension_numbers = #tpu.dot_dimension_numbers<[1], [0], [0], [1], [0, 0, 1, 1], [], []>} : vector<16x128xf32>, vector<128x128xf32>, vector<16x128xf32> -> vector<16x128xf32>
    %c2_55 = arith.constant 2 : index
    %c0_56 = arith.constant 0 : index
    %c0_57 = arith.constant 0 : index
    %63 = vector.load %arg4[%c2_55, %c0_56, %c0_57] : memref<4x1x128xf32, #tpu.memory_space<vmem>>, vector<1x1x128xf32>
    %64 = vector.shape_cast %63 : vector<1x1x128xf32> to vector<1x128xf32>
    %65 = vector.broadcast %64 : vector<1x128xf32> to vector<16x128xf32>
    %66 = arith.addf %62, %65 : vector<16x128xf32>
    %cst_58 = arith.constant 0.000000e+00 : f32
    %67 = vector.broadcast %cst_58 : f32 to vector<16x128xf32>
    %68 = arith.maximumf %66, %67 : vector<16x128xf32>
    %c2_59 = arith.constant 2 : index
    %c0_60 = arith.constant 0 : index
    %c0_61 = arith.constant 0 : index
    %69 = vector.load %arg5[%c2_59, %c0_60, %c0_61] : memref<4x128x128xf32, #tpu.memory_space<vmem>>, vector<1x128x128xf32>
    %70 = vector.shape_cast %69 : vector<1x128x128xf32> to vector<128x128xf32>
    %cst_62 = arith.constant dense<0.000000e+00> : vector<16x128xf32>
    %71 = tpu.matmul %68, %70, %cst_62 {dimension_numbers = #tpu.dot_dimension_numbers<[1], [0], [0], [1], [0, 0, 1, 1], [], []>} : vector<16x128xf32>, vector<128x128xf32>, vector<16x128xf32> -> vector<16x128xf32>
    %c2_63 = arith.constant 2 : index
    %c0_64 = arith.constant 0 : index
    %c0_65 = arith.constant 0 : index
    %72 = vector.load %arg6[%c2_63, %c0_64, %c0_65] : memref<4x1x128xf32, #tpu.memory_space<vmem>>, vector<1x1x128xf32>
    %73 = vector.shape_cast %72 : vector<1x1x128xf32> to vector<1x128xf32>
    %74 = vector.broadcast %73 : vector<1x128xf32> to vector<16x128xf32>
    %75 = arith.addf %71, %74 : vector<16x128xf32>
    %cst_66 = arith.constant 0.000000e+00 : f32
    %76 = vector.broadcast %cst_66 : f32 to vector<16x128xf32>
    %77 = arith.maximumf %75, %76 : vector<16x128xf32>
    %cst_67 = arith.constant dense<0xFF800000> : vector<128xf32>
    %78 = vector.multi_reduction <maximumf>, %77, %cst_67 [0] : vector<16x128xf32> to vector<128xf32>
    %79 = vector.shape_cast %78 : vector<128xf32> to vector<1x128xf32>
    %c0_68 = arith.constant 0 : index
    %c384 = arith.constant 384 : index
    %80 = vector.load %arg11[%c0_68, %c384] : memref<1x640xf32, #tpu.memory_space<vmem>>, vector<1x128xf32>
    tpu.vector_store %arg11[%c0_68, %c384], %79 {strides = array<i32>} : memref<1x640xf32, #tpu.memory_space<vmem>>, vector<1x128xf32>,
    %cst_69 = arith.constant dense<0.000000e+00> : vector<16x128xf32>
    %81 = tpu.matmul %2, %77, %cst_69 {dimension_numbers = #tpu.dot_dimension_numbers<[1], [0], [0], [1], [0, 0, 1, 1], [], []>} : vector<16x16xf32>, vector<16x128xf32>, vector<16x128xf32> -> vector<16x128xf32>
    %82 = arith.addf %77, %81 : vector<16x128xf32>
    %c3 = arith.constant 3 : index
    %c0_70 = arith.constant 0 : index
    %c0_71 = arith.constant 0 : index
    %83 = vector.load %arg3[%c3, %c0_70, %c0_71] : memref<4x128x128xf32, #tpu.memory_space<vmem>>, vector<1x128x128xf32>
    %84 = vector.shape_cast %83 : vector<1x128x128xf32> to vector<128x128xf32>
    %cst_72 = arith.constant dense<0.000000e+00> : vector<16x128xf32>
    %85 = tpu.matmul %82, %84, %cst_72 {dimension_numbers = #tpu.dot_dimension_numbers<[1], [0], [0], [1], [0, 0, 1, 1], [], []>} : vector<16x128xf32>, vector<128x128xf32>, vector<16x128xf32> -> vector<16x128xf32>
    %c3_73 = arith.constant 3 : index
    %c0_74 = arith.constant 0 : index
    %c0_75 = arith.constant 0 : index
    %86 = vector.load %arg4[%c3_73, %c0_74, %c0_75] : memref<4x1x128xf32, #tpu.memory_space<vmem>>, vector<1x1x128xf32>
    %87 = vector.shape_cast %86 : vector<1x1x128xf32> to vector<1x128xf32>
    %88 = vector.broadcast %87 : vector<1x128xf32> to vector<16x128xf32>
    %89 = arith.addf %85, %88 : vector<16x128xf32>
    %cst_76 = arith.constant 0.000000e+00 : f32
    %90 = vector.broadcast %cst_76 : f32 to vector<16x128xf32>
    %91 = arith.maximumf %89, %90 : vector<16x128xf32>
    %c3_77 = arith.constant 3 : index
    %c0_78 = arith.constant 0 : index
    %c0_79 = arith.constant 0 : index
    %92 = vector.load %arg5[%c3_77, %c0_78, %c0_79] : memref<4x128x128xf32, #tpu.memory_space<vmem>>, vector<1x128x128xf32>
    %93 = vector.shape_cast %92 : vector<1x128x128xf32> to vector<128x128xf32>
    %cst_80 = arith.constant dense<0.000000e+00> : vector<16x128xf32>
    %94 = tpu.matmul %91, %93, %cst_80 {dimension_numbers = #tpu.dot_dimension_numbers<[1], [0], [0], [1], [0, 0, 1, 1], [], []>} : vector<16x128xf32>, vector<128x128xf32>, vector<16x128xf32> -> vector<16x128xf32>
    %c3_81 = arith.constant 3 : index
    %c0_82 = arith.constant 0 : index
    %c0_83 = arith.constant 0 : index
    %95 = vector.load %arg6[%c3_81, %c0_82, %c0_83] : memref<4x1x128xf32, #tpu.memory_space<vmem>>, vector<1x1x128xf32>
    %96 = vector.shape_cast %95 : vector<1x1x128xf32> to vector<1x128xf32>
    %97 = vector.broadcast %96 : vector<1x128xf32> to vector<16x128xf32>
    %98 = arith.addf %94, %97 : vector<16x128xf32>
    %cst_84 = arith.constant 0.000000e+00 : f32
    %99 = vector.broadcast %cst_84 : f32 to vector<16x128xf32>
    %100 = arith.maximumf %98, %99 : vector<16x128xf32>
    %cst_85 = arith.constant dense<0xFF800000> : vector<128xf32>
    %101 = vector.multi_reduction <maximumf>, %100, %cst_85 [0] : vector<16x128xf32> to vector<128xf32>
    %102 = vector.shape_cast %101 : vector<128xf32> to vector<1x128xf32>
    %c0_86 = arith.constant 0 : index
    %c512 = arith.constant 512 : index
    %103 = vector.load %arg11[%c0_86, %c512] : memref<1x640xf32, #tpu.memory_space<vmem>>, vector<1x128xf32>
    tpu.vector_store %arg11[%c0_86, %c512], %102 {strides = array<i32>} : memref<1x640xf32, #tpu.memory_space<vmem>>, vector<1x128xf32>,
    %c0_87 = arith.constant 0 : index
    %c0_88 = arith.constant 0 : index
    %104 = vector.load %arg11[%c0_87, %c0_88] : memref<1x640xf32, #tpu.memory_space<vmem>>, vector<1x640xf32>
    %c0_89 = arith.constant 0 : index
    %c0_90 = arith.constant 0 : index
    %105 = vector.load %arg7[%c0_89, %c0_90] : memref<640x128xf32, #tpu.memory_space<vmem>>, vector<640x128xf32>
    %cst_91 = arith.constant dense<0.000000e+00> : vector<1x128xf32>
    %106 = tpu.matmul %104, %105, %cst_91 {dimension_numbers = #tpu.dot_dimension_numbers<[1], [0], [0], [1], [0, 0, 1, 1], [], []>} : vector<1x640xf32>, vector<640x128xf32>, vector<1x128xf32> -> vector<1x128xf32>
    %c0_92 = arith.constant 0 : index
    %c0_93 = arith.constant 0 : index
    %107 = vector.load %arg8[%c0_92, %c0_93] : memref<1x128xf32, #tpu.memory_space<vmem>>, vector<1x128xf32>
    %108 = arith.addf %106, %107 : vector<1x128xf32>
    %c0_94 = arith.constant 0 : index
    %c0_95 = arith.constant 0 : index
    %c0_96 = arith.constant 0 : index
    %109 = vector.load %arg9[%c0_94, %c0_95, %c0_96] : memref<1x1x128xf32, #tpu.memory_space<vmem>>, vector<1x1x128xf32>
    %110 = vector.shape_cast %109 : vector<1x1x128xf32> to vector<1x128xf32>
    %111 = vector.shape_cast %108 : vector<1x128xf32> to vector<1x1x128xf32>
    tpu.vector_store %arg9[%c0_94, %c0_95, %c0_96], %111 {strides = array<i32>} : memref<1x1x128xf32, #tpu.memory_space<vmem>>, vector<1x1x128xf32>,
    return
  }
  func.func @transform_0(%arg0: i32) -> (i32, i32, i32) {
    %c0_i32 = arith.constant 0 : i32
    %c0_i32_0 = arith.constant 0 : i32
    %c0_i32_1 = arith.constant 0 : i32
    return %arg0, %c0_i32, %c0_i32_0 : i32, i32, i32
  }
  func.func @transform_1(%arg0: i32) -> (i32, i32, i32) {
    %c0_i32 = arith.constant 0 : i32
    %c0_i32_0 = arith.constant 0 : i32
    %c0_i32_1 = arith.constant 0 : i32
    return %arg0, %c0_i32, %c0_i32_0 : i32, i32, i32
  }
  func.func @transform_2(%arg0: i32) -> (i32, i32, i32) {
    %c0_i32 = arith.constant 0 : i32
    %c0_i32_0 = arith.constant 0 : i32
    %c0_i32_1 = arith.constant 0 : i32
    %c0_i32_2 = arith.constant 0 : i32
    return %c0_i32, %c0_i32_0, %c0_i32_1 : i32, i32, i32
  }
  func.func @transform_3(%arg0: i32) -> (i32, i32, i32) {
    %c0_i32 = arith.constant 0 : i32
    %c0_i32_0 = arith.constant 0 : i32
    %c0_i32_1 = arith.constant 0 : i32
    %c0_i32_2 = arith.constant 0 : i32
    return %c0_i32, %c0_i32_0, %c0_i32_1 : i32, i32, i32
  }
  func.func @transform_4(%arg0: i32) -> (i32, i32, i32) {
    %c0_i32 = arith.constant 0 : i32
    %c0_i32_0 = arith.constant 0 : i32
    %c0_i32_1 = arith.constant 0 : i32
    %c0_i32_2 = arith.constant 0 : i32
    return %c0_i32, %c0_i32_0, %c0_i32_1 : i32, i32, i32
  }
  func.func @transform_5(%arg0: i32) -> (i32, i32, i32) {
    %c0_i32 = arith.constant 0 : i32
    %c0_i32_0 = arith.constant 0 : i32
    %c0_i32_1 = arith.constant 0 : i32
    %c0_i32_2 = arith.constant 0 : i32
    return %c0_i32, %c0_i32_0, %c0_i32_1 : i32, i32, i32
  }
  func.func @transform_6(%arg0: i32) -> (i32, i32) {
    %c0_i32 = arith.constant 0 : i32
    %c0_i32_0 = arith.constant 0 : i32
    %c0_i32_1 = arith.constant 0 : i32
    return %c0_i32, %c0_i32_0 : i32, i32
  }
  func.func @transform_7(%arg0: i32) -> (i32, i32) {
    %c0_i32 = arith.constant 0 : i32
    %c0_i32_0 = arith.constant 0 : i32
    %c0_i32_1 = arith.constant 0 : i32
    return %c0_i32, %c0_i32_0 : i32, i32
  }
  func.func @transform_8(%arg0: i32) -> (i32, i32, i32) {
    %c0_i32 = arith.constant 0 : i32
    %c0_i32_0 = arith.constant 0 : i32
    %c0_i32_1 = arith.constant 0 : i32
    return %arg0, %c0_i32, %c0_i32_0 : i32, i32, i32
  }
}

</mosaic_0001>

<llo_original>
// kernel: tpu_custom_call.1
$region0: #{tpu_custom_call.1}
  #allocation0 [shape = 'u32[]', space=smem, size = 0x4, offset = 0x4, fixed_abs, tag = 'smem constant byte address 0x4 - core index']
  #allocation1 [shape = 'u32[144,128]{1,0:T(1,128)}', space=vmem, size = 0x12000, scoped, tag = 'internal scratch']
  #allocation2 [shape = 'f32[16,128]{1,0:T(8,128)}', space=vmem, size = 0x2000, scoped, tag = 'scratch operand']
  #allocation3 [shape = 'f32[1,640]{1,0:T(1,128)}', space=vmem, size = 0xa00, scoped, tag = 'scratch operand']
  %s0 = inlined_call_operand.vmem [shape: bf16[8,16,16], index: 0, kind: input, shape index: {}]
  %s1 = inlined_call_operand.vmem [shape: f32[8,16,8], index: 1, kind: input, shape index: {}]
  %s2 = inlined_call_operand.hbm [shape: f32[4,128,128], index: 2, kind: input, shape index: {}]
  %s3 = inlined_call_operand.vmem [shape: f32[4,1,128], index: 3, kind: input, shape index: {}]
  %s4 = inlined_call_operand.hbm [shape: f32[4,128,128], index: 4, kind: input, shape index: {}]
  %s5 = inlined_call_operand.vmem [shape: f32[4,1,128], index: 5, kind: input, shape index: {}]
  %s6 = inlined_call_operand.hbm [shape: f32[640,128], index: 6, kind: input, shape index: {}]
  %s7 = inlined_call_operand.vmem [shape: f32[1,128], index: 7, kind: input, shape index: {}]
  %s8 = inlined_call_operand.hbm [shape: f32[8,1,128], index: 8, kind: output, shape index: {}]
  %s9 = sld [smem:[#allocation0]]
  $region77: #{tpu_custom_call.1} parent=0
    _
  %s11 = ssub.s32 1, %s9
  %s12 = scalar_select 0, %s11, %s9
  $region1: #{tpu_custom_call.1} parent=0
    #allocation4 [shape = 'u8[262144]{0}', space=vmem, size = 0x40000, scoped, tag = 'input window, operand 2, single buffered']
    #allocation5 [shape = 's32[2]{0}', space=sflag, size = 0x8, scoped, tag = 'scoped memory for tpu_custom_call.1']
    #allocation6 [shape = 's32[2]{0}', space=sflag, size = 0x8, scoped, tag = 'scoped memory for tpu_custom_call.1']
    #allocation7 [shape = 'u8[262144]{0}', space=vmem, size = 0x40000, scoped, tag = 'input window, operand 4, single buffered']
    #allocation8 [shape = 's32[1]{0}', space=sflag, size = 0x4, scoped, tag = 'scoped memory for tpu_custom_call.1']
    #allocation9 [shape = 'u8[327680]{0}', space=vmem, size = 0x50000, scoped, tag = 'input window, operand 6, single buffered']
    #allocation10 [shape = 'u8[1024]{0}', space=vmem, size = 0x400, scoped, tag = 'output window, operand 0']
    %13 = vsyncpa [#allocation5], 0
    %14 = vsyncpa [#allocation8], 0
    %15 = vsyncpa [#allocation6], 0
    %s16 = scalar_lea.sflag [#allocation6], 1
    %17 = vsyncpa %s16, 0
    loop: start=0, step=1, limit=10
    $region2: #{tpu_custom_call.1} parent=1 // loop_pre_header
      _
    $region3: #{tpu_custom_call.1} parent=1 // loop_header
      %s19 = sphi 0, %s23
      %p20 = scmp.ge.s32.totalorder %s19, 10
      %s29 = sphi 0, %s31
      %s32 = sphi 0, %s29
      %s33 = sphi 0, %s32
      %s49 = sphi 0, %s33
      %s55 = sphi 0, %s57
      %s58 = sphi 0, %s55
      %s59 = sphi 0, %s58
      %s75 = sphi 0, %s59
      %s79 = sphi 0, %s79
      %s81 = sphi 0, %s79
      %s82 = sphi 0, %s81
      %s96 = sphi 0, %s82
      %s100 = sphi 0, %s100
      %s102 = sphi 0, %s100
      %s103 = sphi 0, %s102
      %s117 = sphi 0, %s103
      %s121 = sphi 0, %s121
      %s123 = sphi 0, %s121
      %s124 = sphi 0, %s123
      %s138 = sphi 0, %s124
      %s142 = sphi 0, %s142
      %s144 = sphi 0, %s142
      %s145 = sphi 0, %s144
      %s159 = sphi 0, %s145
      %s163 = sphi 0, %s163
      %s165 = sphi 0, %s163
      %s166 = sphi 0, %s165
      %s180 = sphi 0, %s166
      %s184 = sphi 0, %s184
      %s186 = sphi 0, %s184
      %s187 = sphi 0, %s186
      %s201 = sphi 0, %s187
      %s207 = sphi 0, %s209
      %s210 = sphi 0, %s207
      %s211 = sphi 0, %s210
      %s227 = sphi 0, %s211
    $region4: #{tpu_custom_call.1} parent=1 // loop_header_branch
      %22 = sbr.rel (%p20) target = $region8
    $region5: #{tpu_custom_call.1} parent=1 // loop_body
      %s24 = ssub.s32 %s19, 1
      %s25 = ssub.s32 %s19, 2
      %s26 = sadd.s32 %s19, 1
      %s27 = ssub.s32 %s19, %s26
      %p28 = scmp.eq.s32.totalorder %s27, 0
      %s30 = sadd.s32 %s29, 1
      %s31 = scalar_select %p28, %s29, %s30
      %p34 = pneg %p28
      %p35 = scmp.eq.s32.totalorder %s19, 7
      %p36 = por %p34, %p35
      %p37 = scmp.ne.s32.totalorder %s29, %s32
      %p38 = scmp.eq.s32.totalorder %s19, 0
      %p39 = por %p37, %p38
      %p40 = scmp.ne.s32.totalorder %s29, %s32
      %p41 = scmp.eq.s32.totalorder %s24, 7
      %p42 = por %p40, %p41
      %p43 = scmp.ne.s32.totalorder %s32, %s33
      %p44 = scmp.eq.s32.totalorder %s24, 0
      %p45 = por %p43, %p44
      %p46 = scmp.ne.s32.totalorder %s32, %s33
      %p47 = scmp.eq.s32.totalorder %s25, 7
      %p48 = por %p46, %p47
      %p50 = scmp.ne.s32.totalorder %s33, %s49
      %p51 = scmp.eq.s32.totalorder %s25, 0
      %p52 = por %p50, %p51
      %s53 = ssub.s32 %s19, %s26
      %p54 = scmp.eq.s32.totalorder %s53, 0
      %s56 = sadd.s32 %s55, 1
      %s57 = scalar_select %p54, %s55, %s56
      %p60 = pneg %p54
      %p61 = scmp.eq.s32.totalorder %s19, 7
      %p62 = por %p60, %p61
      %p63 = scmp.ne.s32.totalorder %s55, %s58
      %p64 = scmp.eq.s32.totalorder %s19, 0
      %p65 = por %p63, %p64
      %p66 = scmp.ne.s32.totalorder %s55, %s58
      %p67 = scmp.eq.s32.totalorder %s24, 7
      %p68 = por %p66, %p67
      %p69 = scmp.ne.s32.totalorder %s58, %s59
      %p70 = scmp.eq.s32.totalorder %s24, 0
      %p71 = por %p69, %p70
      %p72 = scmp.ne.s32.totalorder %s58, %s59
      %p73 = scmp.eq.s32.totalorder %s25, 7
      %p74 = por %p72, %p73
      %p76 = scmp.ne.s32.totalorder %s59, %s75
      %p77 = scmp.eq.s32.totalorder %s25, 0
      %p78 = por %p76, %p77
      %s80 = sadd.s32 %s79, 1
      %p83 = scmp.eq.s32.totalorder %s19, 7
      %p84 = scmp.ne.s32.totalorder %s79, %s81
      %p85 = scmp.eq.s32.totalorder %s19, 0
      %p86 = por %p84, %p85
      %p87 = scmp.ne.s32.totalorder %s79, %s81
      %p88 = scmp.eq.s32.totalorder %s24, 7
      %p89 = por %p87, %p88
      %p90 = scmp.ne.s32.totalorder %s81, %s82
      %p91 = scmp.eq.s32.totalorder %s24, 0
      %p92 = por %p90, %p91
      %p93 = scmp.ne.s32.totalorder %s81, %s82
      %p94 = scmp.eq.s32.totalorder %s25, 7
      %p95 = por %p93, %p94
      %p97 = scmp.ne.s32.totalorder %s82, %s96
      %p98 = scmp.eq.s32.totalorder %s25, 0
      %p99 = por %p97, %p98
      %s101 = sadd.s32 %s100, 1
      %p104 = scmp.eq.s32.totalorder %s19, 7
      %p105 = scmp.ne.s32.totalorder %s100, %s102
      %p106 = scmp.eq.s32.totalorder %s19, 0
      %p107 = por %p105, %p106
      %p108 = scmp.ne.s32.totalorder %s100, %s102
      %p109 = scmp.eq.s32.totalorder %s24, 7
      %p110 = por %p108, %p109
      %p111 = scmp.ne.s32.totalorder %s102, %s103
      %p112 = scmp.eq.s32.totalorder %s24, 0
      %p113 = por %p111, %p112
      %p114 = scmp.ne.s32.totalorder %s102, %s103
      %p115 = scmp.eq.s32.totalorder %s25, 7
      %p116 = por %p114, %p115
      %p118 = scmp.ne.s32.totalorder %s103, %s117
      %p119 = scmp.eq.s32.totalorder %s25, 0
      %p120 = por %p118, %p119
      %s122 = sadd.s32 %s121, 1
      %p125 = scmp.eq.s32.totalorder %s19, 7
      %p126 = scmp.ne.s32.totalorder %s121, %s123
      %p127 = scmp.eq.s32.totalorder %s19, 0
      %p128 = por %p126, %p127
      %p129 = scmp.ne.s32.totalorder %s121, %s123
      %p130 = scmp.eq.s32.totalorder %s24, 7
      %p131 = por %p129, %p130
      %p132 = scmp.ne.s32.totalorder %s123, %s124
      %p133 = scmp.eq.s32.totalorder %s24, 0
      %p134 = por %p132, %p133
      %p135 = scmp.ne.s32.totalorder %s123, %s124
      %p136 = scmp.eq.s32.totalorder %s25, 7
      %p137 = por %p135, %p136
      %p139 = scmp.ne.s32.totalorder %s124, %s138
      %p140 = scmp.eq.s32.totalorder %s25, 0
      %p141 = por %p139, %p140
      %s143 = sadd.s32 %s142, 1
      %p146 = scmp.eq.s32.totalorder %s19, 7
      %p147 = scmp.ne.s32.totalorder %s142, %s144
      %p148 = scmp.eq.s32.totalorder %s19, 0
      %p149 = por %p147, %p148
      %p150 = scmp.ne.s32.totalorder %s142, %s144
      %p151 = scmp.eq.s32.totalorder %s24, 7
      %p152 = por %p150, %p151
      %p153 = scmp.ne.s32.totalorder %s144, %s145
      %p154 = scmp.eq.s32.totalorder %s24, 0
      %p155 = por %p153, %p154
      %p156 = scmp.ne.s32.totalorder %s144, %s145
      %p157 = scmp.eq.s32.totalorder %s25, 7
      %p158 = por %p156, %p157
      %p160 = scmp.ne.s32.totalorder %s145, %s159
      %p161 = scmp.eq.s32.totalorder %s25, 0
      %p162 = por %p160, %p161
      %s164 = sadd.s32 %s163, 1
      %p167 = scmp.eq.s32.totalorder %s19, 7
      %p168 = scmp.ne.s32.totalorder %s163, %s165
      %p169 = scmp.eq.s32.totalorder %s19, 0
      %p170 = por %p168, %p169
      %p171 = scmp.ne.s32.totalorder %s163, %s165
      %p172 = scmp.eq.s32.totalorder %s24, 7
      %p173 = por %p171, %p172
      %p174 = scmp.ne.s32.totalorder %s165, %s166
      %p175 = scmp.eq.s32.totalorder %s24, 0
      %p176 = por %p174, %p175
      %p177 = scmp.ne.s32.totalorder %s165, %s166
      %p178 = scmp.eq.s32.totalorder %s25, 7
      %p179 = por %p177, %p178
      %p181 = scmp.ne.s32.totalorder %s166, %s180
      %p182 = scmp.eq.s32.totalorder %s25, 0
      %p183 = por %p181, %p182
      %s185 = sadd.s32 %s184, 1
      %p188 = scmp.eq.s32.totalorder %s19, 7
      %p189 = scmp.ne.s32.totalorder %s184, %s186
      %p190 = scmp.eq.s32.totalorder %s19, 0
      %p191 = por %p189, %p190
      %p192 = scmp.ne.s32.totalorder %s184, %s186
      %p193 = scmp.eq.s32.totalorder %s24, 7
      %p194 = por %p192, %p193
      %p195 = scmp.ne.s32.totalorder %s186, %s187
      %p196 = scmp.eq.s32.totalorder %s24, 0
      %p197 = por %p195, %p196
      %p198 = scmp.ne.s32.totalorder %s186, %s187
      %p199 = scmp.eq.s32.totalorder %s25, 7
      %p200 = por %p198, %p199
      %p202 = scmp.ne.s32.totalorder %s187, %s201
      %p203 = scmp.eq.s32.totalorder %s25, 0
      %p204 = por %p202, %p203
      %s205 = ssub.s32 %s19, %s26
      %p206 = scmp.eq.s32.totalorder %s205, 0
      %s208 = sadd.s32 %s207, 1
      %s209 = scalar_select %p206, %s207, %s208
      %p212 = pneg %p206
      %p213 = scmp.eq.s32.totalorder %s19, 7
      %p214 = por %p212, %p213
      %p215 = scmp.ne.s32.totalorder %s207, %s210
      %p216 = scmp.eq.s32.totalorder %s19, 0
      %p217 = por %p215, %p216
      %p218 = scmp.ne.s32.totalorder %s207, %s210
      %p219 = scmp.eq.s32.totalorder %s24, 7
      %p220 = por %p218, %p219
      %p221 = scmp.ne.s32.totalorder %s210, %s211
      %p222 = scmp.eq.s32.totalorder %s24, 0
      %p223 = por %p221, %p222
      %p224 = scmp.ne.s32.totalorder %s210, %s211
      %p225 = scmp.eq.s32.totalorder %s25, 7
      %p226 = por %p224, %p225
      %p228 = scmp.ne.s32.totalorder %s211, %s227
      %p229 = scmp.eq.s32.totalorder %s25, 0
      %p230 = por %p228, %p229
      %p231 = scmp.le.s32.totalorder 1, %s19
      %p232 = scmp.lt.s32.totalorder %s19, 9
      %p233 = pnand %p231, %p232
      %p234 = pneg %p233
      // Predicated region
      $region9: #{tpu_custom_call.1} parent=5 // pred_check
        _
      $region10: #{tpu_custom_call.1} parent=5 // pred_check_branch
        %236 = sbr.rel (%p233) target = $region12
      $region11: #{tpu_custom_call.1} parent=5 // pred_region
        %s237 = ssub.s32 %s19, 1
        // Predicated region
        $region13: #{tpu_custom_call.1} parent=11 // pred_check
          %p238 = pneg %p92
        $region14: #{tpu_custom_call.1} parent=11 // pred_check_branch
          %240 = sbr.rel (%p238) target = $region16
        $region15: #{tpu_custom_call.1} parent=11 // pred_region
          %s242 = ssub.s32 8192, 8192
          %243 = vsyncadd [#allocation5], %s242
          %s244 = sshll.u32 [#allocation4], 4
          %s245 = int_to_ptr.vmem [resolvable:$true] %s244
          %250 = dma.hbm_to_vmem [thread:$0]  %s2, 8192, %s245, [#allocation5], 128, 128, 8
        $region16: #{tpu_custom_call.1} parent=11 // pred_fallthru
          _
        // Predicated region
        $region17: #{tpu_custom_call.1} parent=11 // pred_check
          %p251 = pneg %p113
        $region18: #{tpu_custom_call.1} parent=11 // pred_check_branch
          %253 = sbr.rel (%p251) target = $region20
        $region19: #{tpu_custom_call.1} parent=11 // pred_region
          _
        $region20: #{tpu_custom_call.1} parent=11 // pred_fallthru
          _
        // Predicated region
        $region21: #{tpu_custom_call.1} parent=11 // pred_check
          %p254 = pneg %p134
        $region22: #{tpu_custom_call.1} parent=11 // pred_check_branch
          %256 = sbr.rel (%p254) target = $region24
        $region23: #{tpu_custom_call.1} parent=11 // pred_region
          %s258 = ssub.s32 8192, 8192
          %259 = vsyncadd [#allocation8], %s258
          %s260 = sshll.u32 [#allocation7], 4
          %s261 = int_to_ptr.vmem [resolvable:$true] %s260
          %266 = dma.hbm_to_vmem [thread:$0]  %s4, 8192, %s261, [#allocation8], 128, 128, 8
        $region24: #{tpu_custom_call.1} parent=11 // pred_fallthru
          _
        // Predicated region
        $region25: #{tpu_custom_call.1} parent=11 // pred_check
          %p267 = pneg %p155
        $region26: #{tpu_custom_call.1} parent=11 // pred_check_branch
          %269 = sbr.rel (%p267) target = $region28
        $region27: #{tpu_custom_call.1} parent=11 // pred_region
          _
        $region28: #{tpu_custom_call.1} parent=11 // pred_fallthru
          _
        // Predicated region
        $region29: #{tpu_custom_call.1} parent=11 // pred_check
          %p270 = pneg %p176
        $region30: #{tpu_custom_call.1} parent=11 // pred_check_branch
          %272 = sbr.rel (%p270) target = $region32
        $region31: #{tpu_custom_call.1} parent=11 // pred_region
          %s274 = ssub.s32 10240, 10240
          %275 = vsyncadd [#allocation8], %s274
          %s276 = sshll.u32 [#allocation9], 4
          %s277 = int_to_ptr.vmem [resolvable:$true] %s276
          %282 = dma.hbm_to_vmem [thread:$0]  %s6, 10240, %s277, [#allocation8], 128, 128, 8
        $region32: #{tpu_custom_call.1} parent=11 // pred_fallthru
          _
        // Predicated region
        $region33: #{tpu_custom_call.1} parent=11 // pred_check
          %p283 = pneg %p197
        $region34: #{tpu_custom_call.1} parent=11 // pred_check_branch
          %285 = sbr.rel (%p283) target = $region36
        $region35: #{tpu_custom_call.1} parent=11 // pred_region
          _
        $region36: #{tpu_custom_call.1} parent=11 // pred_fallthru
          _
      $region12: #{tpu_custom_call.1} parent=5 // pred_fallthru
        _
      %p286 = scmp.lt.s32.totalorder %s19, 8
      // Predicated region
      $region37: #{tpu_custom_call.1} parent=5 // pred_check
        %p287 = pneg %p286
      $region38: #{tpu_custom_call.1} parent=5 // pred_check_branch
        %289 = sbr.rel (%p287) target = $region40
      $region39: #{tpu_custom_call.1} parent=5 // pred_region
        // Predicated region
        $region41: #{tpu_custom_call.1} parent=39 // pred_check
          %p290 = pneg %p39
        $region42: #{tpu_custom_call.1} parent=39 // pred_check_branch
          %292 = sbr.rel (%p290) target = $region44
        $region43: #{tpu_custom_call.1} parent=39 // pred_region
          %p293 = scmp.lt.s32.totalorder %s19, 7
          %s294 = scalar_select %p293, %s19, 7
          %s295 = smul.addr %s294, 2
          %s296 = smul.addr %s295, 4
          %s297 = scalar_lea.vmem %s0, %s296
        $region44: #{tpu_custom_call.1} parent=39 // pred_fallthru
          _
        // Predicated region
        $region45: #{tpu_custom_call.1} parent=39 // pred_check
          %p298 = pneg %p65
        $region46: #{tpu_custom_call.1} parent=39 // pred_check_branch
          %300 = sbr.rel (%p298) target = $region48
        $region47: #{tpu_custom_call.1} parent=39 // pred_region
          %p301 = scmp.lt.s32.totalorder %s19, 7
          %s302 = scalar_select %p301, %s19, 7
          %s303 = smul.addr %s302, 2
          %s304 = smul.addr %s303, 8
          %s305 = scalar_lea.vmem %s1, %s304
        $region48: #{tpu_custom_call.1} parent=39 // pred_fallthru
          _
      $region40: #{tpu_custom_call.1} parent=5 // pred_fallthru
        _
      %p306 = scmp.le.s32.totalorder 1, %s19
      %p307 = scmp.lt.s32.totalorder %s19, 9
      %p308 = pnand %p306, %p307
      %p309 = pneg %p308
      // Predicated region
      $region49: #{tpu_custom_call.1} parent=5 // pred_check
        _
      $region50: #{tpu_custom_call.1} parent=5 // pred_check_branch
        %311 = sbr.rel (%p308) target = $region52
      $region51: #{tpu_custom_call.1} parent=5 // pred_region
        %s312 = ssub.s32 %s19, 1
        // Predicated region
        $region53: #{tpu_custom_call.1} parent=51 // pred_check
          %p313 = pneg %p92
        $region54: #{tpu_custom_call.1} parent=51 // pred_check_branch
          %315 = sbr.rel (%p313) target = $region56
        $region55: #{tpu_custom_call.1} parent=51 // pred_region
          %316 = dma.done [#allocation5], 8192
        $region56: #{tpu_custom_call.1} parent=51 // pred_fallthru
          _
        // Predicated region
        $region57: #{tpu_custom_call.1} parent=51 // pred_check
          %p317 = pneg %p134
        $region58: #{tpu_custom_call.1} parent=51 // pred_check_branch
          %319 = sbr.rel (%p317) target = $region60
        $region59: #{tpu_custom_call.1} parent=51 // pred_region
          %320 = dma.done [#allocation8], 8192
        $region60: #{tpu_custom_call.1} parent=51 // pred_fallthru
          _
        // Predicated region
        $region61: #{tpu_custom_call.1} parent=51 // pred_check
          %p321 = pneg %p176
        $region62: #{tpu_custom_call.1} parent=51 // pred_check_branch
          %323 = sbr.rel (%p321) target = $region64
        $region63: #{tpu_custom_call.1} parent=51 // pred_region
          %324 = dma.done [#allocation8], 10240
        $region64: #{tpu_custom_call.1} parent=51 // pred_fallthru
          _
        %p325 = scmp.lt.s32.totalorder %s24, 7
        %s326 = scalar_select %p325, %s24, 7
        %s327 = smul.addr %s326, 2
        %s328 = smul.addr %s327, 4
        %s329 = scalar_lea.vmem %s0, %s328
        %p330 = pneg %p45
        %p331 = pneg %p42
        %p332 = scmp.lt.s32.totalorder %s24, 7
        %s333 = scalar_select %p332, %s24, 7
        %s334 = smul.addr %s333, 2
        %s335 = smul.addr %s334, 8
        %s336 = scalar_lea.vmem %s1, %s335
        %p337 = pneg %p71
        %p338 = pneg %p68
        %p339 = pneg %p92
        %p340 = pneg %p89
        %p341 = pneg %p113
        %p342 = pneg %p110
        %p343 = pneg %p134
        %p344 = pneg %p131
        %p345 = pneg %p155
        %p346 = pneg %p152
        %p347 = pneg %p176
        %p348 = pneg %p173
        %p349 = pneg %p197
        %p350 = pneg %p194
        %p351 = pneg %p223
        %p352 = pneg %p220
        %s353 = sand.u32 %s210, 1
        %s354 = scalar_lea.sflag [#allocation6], %s353
        %s355 = sand.u32 %s210, 1
        %s356 = scalar_lea.vmem [#allocation10], %s355
        %p357 = scmp.lt.s32.totalorder %s24, 7
        %s358 = scalar_select %p357, %s24, 7
        %s359 = smul.addr %s358, 2
        %s360 = smul.addr %s359, 4
        %s361 = scalar_lea.vmem %s0, %s360
        %p362 = scmp.lt.s32.totalorder %s24, 7
        %s363 = scalar_select %p362, %s24, 7
        %s364 = smul.addr %s363, 2
        %s365 = smul.addr %s364, 8
        %s366 = scalar_lea.vmem %s1, %s365
        %v367 = vld [vmem:[%s361] sm:$0xf]
        %v368 = vld [vmem:[%s361 + $0x4] sm:$0xf]
        %v369 = vunpack.c.l.bf16 %v367
        %v370 = vunpack.c.l.bf16 %v368
        %371 = vst [vmem:[#allocation2] sm:$0xff] 0.0
        %372 = vst [vmem:[#allocation2 + $0x8] sm:$0xff] 0.0
        %v373 = vld [vmem:[%s366] sm:$0xff]
        %v374 = vld [vmem:[%s366 + $0x8] sm:$0xff]
        %vm375 = vcmask 64512
        %376 = vst.msk [vmem:[#allocation2] sm:$0xff] %vm375, %v373
        %377 = vst.msk [vmem:[#allocation2 + $0x8] sm:$0xff] %vm375, %v374
        %v378 = vld [vmem:[#allocation2] sm:$0xff]
        %v379 = vld [vmem:[#allocation2 + $0x8] sm:$0xff]
        %v380 = vmax.f32 %v378, %v379
        %v381 = vrot.slane %v380, 4
        %v382 = vmax.f32 %v380, %v381
        %v383 = vrot.slane %v382, 2
        %v384 = vmax.f32 %v382, %v383
        %v385 = vrot.slane %v384, 1
        %v386 = vmax.f32 %v384, %v385
        %v387 = vlaneseq
        %vm388 = vcmp.ge.s32.totalorder %v387, 0
        %vm389 = vcmp.lt.s32.totalorder %v387, 128
        %vm390 = vmand %vm388, %vm389
        %391 = vst.msk [vmem:[#allocation3] sm:$0x1] %vm390, %v386
        %vm392 = vcmask 130048
        %v394 = vsel %vm392, %v369, 0
        %v397 = vsel %vm392, %v370, 0
        %399 = vmatprep.subr.mxu0 0.0
        %400 = vmatpush1.msra.mxu0 %v378
        %401 = vmatprep.subr.mxu0 0.0
        %402 = vmatpush1.msra.mxu0 %v379
        %403 = vmatprep.subr.mxu0 0.0
        %404 = vmatpush1.msra.mxu0 0.0
        %405 = vmatprep.subr.mxu0 0.0
        %406 = vmatpush1.msra.mxu0 0.0
        %407 = vmatprep.subr.mxu0 0.0
        %408 = vmatpush1.msra.mxu0 0.0
        %409 = vmatprep.subr.mxu0 0.0
        %410 = vmatpush1.msra.mxu0 0.0
        %411 = vmatprep.subr.mxu0 0.0
        %412 = vmatpush1.msra.mxu0 0.0
        %413 = vmatprep.subr.mxu0 0.0
        %414 = vmatpush1.msra.mxu0 0.0
        %415 = vmatprep.subr.mxu0 0.0
        %416 = vmatpush1.msra.mxu0 0.0
        %417 = vmatprep.subr.mxu0 0.0
        %418 = vmatpush1.msra.mxu0 0.0
        %419 = vmatprep.subr.mxu0 0.0
        %420 = vmatpush1.msra.mxu0 0.0
        %421 = vmatprep.subr.mxu0 0.0
        %422 = vmatpush1.msra.mxu0 0.0
        %423 = vmatprep.subr.mxu0 0.0
        %424 = vmatpush1.msra.mxu0 0.0
        %425 = vmatprep.subr.mxu0 0.0
        %426 = vmatpush1.msra.mxu0 0.0
        %427 = vmatprep.subr.mxu0 0.0
        %428 = vmatpush1.msra.mxu0 0.0
        %429 = vmatprep.subr.mxu0 0.0
        %430 = vmatpush1.msra.mxu0 0.0
        %431 = vmatprep.subr.mxu0 0.0
        %432 = vmatpush1.msra.mxu0 0.0
        %433 = vmatprep.subr.mxu0 0.0
        %434 = vmatpush1.msra.mxu0 0.0
        %435 = vmatprep.subr.mxu0 0.0
        %436 = vmatpush1.msra.mxu0 0.0
        %437 = vmatprep.subr.mxu0 0.0
        %438 = vmatpush1.msra.mxu0 0.0
        %439 = vmatprep.subr.mxu0 0.0
        %440 = vmatpush1.msra.mxu0 0.0
        %441 = vmatprep.subr.mxu0 0.0
        %442 = vmatpush1.msra.mxu0 0.0
        %443 = vmatprep.subr.mxu0 0.0
        %444 = vmatpush1.msra.mxu0 0.0
        %445 = vmatprep.subr.mxu0 0.0
        %446 = vmatpush1.msra.mxu0 0.0
        %447 = vmatprep.subr.mxu0 0.0
        %448 = vmatpush1.msra.mxu0 0.0
        %449 = vmatprep.subr.mxu0 0.0
        %450 = vmatpush1.msra.mxu0 0.0
        %451 = vmatprep.subr.mxu0 0.0
        %452 = vmatpush1.msra.mxu0 0.0
        %453 = vmatprep.subr.mxu0 0.0
        %454 = vmatpush1.msra.mxu0 0.0
        %455 = vmatprep.subr.mxu0 0.0
        %456 = vmatpush1.msra.mxu0 0.0
        %457 = vmatprep.subr.mxu0 0.0
        %458 = vmatpush1.msra.mxu0 0.0
        %459 = vmatprep.subr.mxu0 0.0
        %460 = vmatpush1.msra.mxu0 0.0
        %461 = vmatprep.subr.mxu0 0.0
        %462 = vmatpush1.msra.mxu0 0.0
        %463 = vmatprep.mubr.f32.mxu0 0.0
        %464 = vmatmul.mubr.f32.gmra.mrb[0].mxu0 %v394
        %v465 = vpop.f32.mrb[0].mxu0
        %v466 = vadd.f32 0.0, %v465
        %v467 = vpop.f32.mrb[0].mxu0
        %468 = vmatprep.mubr.f32.mxu0 0.0
        %469 = vmatmul.mubr.f32.gmra.mrb[0].mxu0 %v397
        %v470 = vpop.f32.mrb[0].mxu0
        %v471 = vadd.f32 0.0, %v470
        %v472 = vpop.f32.mrb[0].mxu0
        %473 = vdwg.mxu0
        %v474 = vadd.f32 %v378, %v466
        %v475 = vadd.f32 %v379, %v471
        %v476 = vld [vmem:[#allocation4] sm:$0xff]
        %v477 = vld [vmem:[#allocation4 + $0x8] sm:$0xff]
        %v478 = vld [vmem:[#allocation4 + $0x10] sm:$0xff]
        %v479 = vld [vmem:[#allocation4 + $0x18] sm:$0xff]
        %v480 = vld [vmem:[#allocation4 + $0x20] sm:$0xff]
        %v481 = vld [vmem:[#allocation4 + $0x28] sm:$0xff]
        %v482 = vld [vmem:[#allocation4 + $0x30] sm:$0xff]
        %v483 = vld [vmem:[#allocation4 + $0x38] sm:$0xff]
        %v484 = vld [vmem:[#allocation4 + $0x40] sm:$0xff]
        %v485 = vld [vmem:[#allocation4 + $0x48] sm:$0xff]
        %v486 = vld [vmem:[#allocation4 + $0x50] sm:$0xff]
        %v487 = vld [vmem:[#allocation4 + $0x58] sm:$0xff]
        %v488 = vld [vmem:[#allocation4 + $0x60] sm:$0xff]
        %v489 = vld [vmem:[#allocation4 + $0x68] sm:$0xff]
        %v490 = vld [vmem:[#allocation4 + $0x70] sm:$0xff]
        %v491 = vld [vmem:[#allocation4 + $0x78] sm:$0xff]
        %v492 = vld [vmem:[%s3] sm:$0x1]
        %v494 = vlaneseq
        %v495 = vshrl.u32 %v494, 7
        %v496 = vsub.s32 0, %v495
        %v497 = vrot.slane %v492, %v496
        %499 = vmatprep.subr.mxu0 0.0
        %500 = vmatpush1.msra.mxu0 %v476
        %501 = vmatprep.subr.mxu0 0.0
        %502 = vmatpush1.msra.mxu0 %v477
        %503 = vmatprep.subr.mxu0 0.0
        %504 = vmatpush1.msra.mxu0 %v478
        %505 = vmatprep.subr.mxu0 0.0
        %506 = vmatpush1.msra.mxu0 %v479
        %507 = vmatprep.subr.mxu0 0.0
        %508 = vmatpush1.msra.mxu0 %v480
        %509 = vmatprep.subr.mxu0 0.0
        %510 = vmatpush1.msra.mxu0 %v481
        %511 = vmatprep.subr.mxu0 0.0
        %512 = vmatpush1.msra.mxu0 %v482
        %513 = vmatprep.subr.mxu0 0.0
        %514 = vmatpush1.msra.mxu0 %v483
        %515 = vmatprep.subr.mxu0 0.0
        %516 = vmatpush1.msra.mxu0 %v484
        %517 = vmatprep.subr.mxu0 0.0
        %518 = vmatpush1.msra.mxu0 %v485
        %519 = vmatprep.subr.mxu0 0.0
        %520 = vmatpush1.msra.mxu0 %v486
        %521 = vmatprep.subr.mxu0 0.0
        %522 = vmatpush1.msra.mxu0 %v487
        %523 = vmatprep.subr.mxu0 0.0
        %524 = vmatpush1.msra.mxu0 %v488
        %525 = vmatprep.subr.mxu0 0.0
        %526 = vmatpush1.msra.mxu0 %v489
        %527 = vmatprep.subr.mxu0 0.0
        %528 = vmatpush1.msra.mxu0 %v490
        %529 = vmatprep.subr.mxu0 0.0
        %530 = vmatpush1.msra.mxu0 %v491
        %531 = vmatprep.subr.mxu0 0.0
        %532 = vmatpush1.msra.mxu0 0.0
        %533 = vmatprep.subr.mxu0 0.0
        %534 = vmatpush1.msra.mxu0 0.0
        %535 = vmatprep.subr.mxu0 0.0
        %536 = vmatpush1.msra.mxu0 0.0
        %537 = vmatprep.subr.mxu0 0.0
        %538 = vmatpush1.msra.mxu0 0.0
        %539 = vmatprep.subr.mxu0 0.0
        %540 = vmatpush1.msra.mxu0 0.0
        %541 = vmatprep.subr.mxu0 0.0
        %542 = vmatpush1.msra.mxu0 0.0
        %543 = vmatprep.subr.mxu0 0.0
        %544 = vmatpush1.msra.mxu0 0.0
        %545 = vmatprep.subr.mxu0 0.0
        %546 = vmatpush1.msra.mxu0 0.0
        %547 = vmatprep.subr.mxu0 0.0
        %548 = vmatpush1.msra.mxu0 0.0
        %549 = vmatprep.subr.mxu0 0.0
        %550 = vmatpush1.msra.mxu0 0.0
        %551 = vmatprep.subr.mxu0 0.0
        %552 = vmatpush1.msra.mxu0 0.0
        %553 = vmatprep.subr.mxu0 0.0
        %554 = vmatpush1.msra.mxu0 0.0
        %555 = vmatprep.subr.mxu0 0.0
        %556 = vmatpush1.msra.mxu0 0.0
        %557 = vmatprep.subr.mxu0 0.0
        %558 = vmatpush1.msra.mxu0 0.0
        %559 = vmatprep.subr.mxu0 0.0
        %560 = vmatpush1.msra.mxu0 0.0
        %561 = vmatprep.subr.mxu0 0.0
        %562 = vmatpush1.msra.mxu0 0.0
        %563 = vmatprep.mubr.f32.mxu0 0.0
        %564 = vmatmul.mubr.f32.gmra.mrb[0].mxu0 %v474
        %v565 = vpop.f32.mrb[0].mxu0
        %v566 = vadd.f32 %v497, %v565
        %v567 = vpop.f32.mrb[0].mxu0
        %568 = vmatprep.mubr.f32.mxu0 0.0
        %569 = vmatmul.mubr.f32.gmra.mrb[0].mxu0 %v475
        %v570 = vpop.f32.mrb[0].mxu0
        %v571 = vadd.f32 %v497, %v570
        %v572 = vpop.f32.mrb[0].mxu0
        %573 = vdwg.mxu0
        %v574 = vmax.f32 %v566, 0.0
        %v575 = vmax.f32 %v571, 0.0
        %v576 = vld [vmem:[#allocation7] sm:$0xff]
        %v577 = vld [vmem:[#allocation7 + $0x8] sm:$0xff]
        %v578 = vld [vmem:[#allocation7 + $0x10] sm:$0xff]
        %v579 = vld [vmem:[#allocation7 + $0x18] sm:$0xff]
        %v580 = vld [vmem:[#allocation7 + $0x20] sm:$0xff]
        %v581 = vld [vmem:[#allocation7 + $0x28] sm:$0xff]
        %v582 = vld [vmem:[#allocation7 + $0x30] sm:$0xff]
        %v583 = vld [vmem:[#allocation7 + $0x38] sm:$0xff]
        %v584 = vld [vmem:[#allocation7 + $0x40] sm:$0xff]
        %v585 = vld [vmem:[#allocation7 + $0x48] sm:$0xff]
        %v586 = vld [vmem:[#allocation7 + $0x50] sm:$0xff]
        %v587 = vld [vmem:[#allocation7 + $0x58] sm:$0xff]
        %v588 = vld [vmem:[#allocation7 + $0x60] sm:$0xff]
        %v589 = vld [vmem:[#allocation7 + $0x68] sm:$0xff]
        %v590 = vld [vmem:[#allocation7 + $0x70] sm:$0xff]
        %v591 = vld [vmem:[#allocation7 + $0x78] sm:$0xff]
        %v592 = vld [vmem:[%s5] sm:$0x1]
        %v594 = vlaneseq
        %v595 = vshrl.u32 %v594, 7
        %v596 = vsub.s32 0, %v595
        %v597 = vrot.slane %v592, %v596
        %599 = vmatprep.subr.mxu0 0.0
        %600 = vmatpush1.msra.mxu0 %v576
        %601 = vmatprep.subr.mxu0 0.0
        %602 = vmatpush1.msra.mxu0 %v577
        %603 = vmatprep.subr.mxu0 0.0
        %604 = vmatpush1.msra.mxu0 %v578
        %605 = vmatprep.subr.mxu0 0.0
        %606 = vmatpush1.msra.mxu0 %v579
        %607 = vmatprep.subr.mxu0 0.0
        %608 = vmatpush1.msra.mxu0 %v580
        %609 = vmatprep.subr.mxu0 0.0
        %610 = vmatpush1.msra.mxu0 %v581
        %611 = vmatprep.subr.mxu0 0.0
        %612 = vmatpush1.msra.mxu0 %v582
        %613 = vmatprep.subr.mxu0 0.0
        %614 = vmatpush1.msra.mxu0 %v583
        %615 = vmatprep.subr.mxu0 0.0
        %616 = vmatpush1.msra.mxu0 %v584
        %617 = vmatprep.subr.mxu0 0.0
        %618 = vmatpush1.msra.mxu0 %v585
        %619 = vmatprep.subr.mxu0 0.0
        %620 = vmatpush1.msra.mxu0 %v586
        %621 = vmatprep.subr.mxu0 0.0
        %622 = vmatpush1.msra.mxu0 %v587
        %623 = vmatprep.subr.mxu0 0.0
        %624 = vmatpush1.msra.mxu0 %v588
        %625 = vmatprep.subr.mxu0 0.0
        %626 = vmatpush1.msra.mxu0 %v589
        %627 = vmatprep.subr.mxu0 0.0
        %628 = vmatpush1.msra.mxu0 %v590
        %629 = vmatprep.subr.mxu0 0.0
        %630 = vmatpush1.msra.mxu0 %v591
        %631 = vmatprep.subr.mxu0 0.0
        %632 = vmatpush1.msra.mxu0 0.0
        %633 = vmatprep.subr.mxu0 0.0
        %634 = vmatpush1.msra.mxu0 0.0
        %635 = vmatprep.subr.mxu0 0.0
        %636 = vmatpush1.msra.mxu0 0.0
        %637 = vmatprep.subr.mxu0 0.0
        %638 = vmatpush1.msra.mxu0 0.0
        %639 = vmatprep.subr.mxu0 0.0
        %640 = vmatpush1.msra.mxu0 0.0
        %641 = vmatprep.subr.mxu0 0.0
        %642 = vmatpush1.msra.mxu0 0.0
        %643 = vmatprep.subr.mxu0 0.0
        %644 = vmatpush1.msra.mxu0 0.0
        %645 = vmatprep.subr.mxu0 0.0
        %646 = vmatpush1.msra.mxu0 0.0
        %647 = vmatprep.subr.mxu0 0.0
        %648 = vmatpush1.msra.mxu0 0.0
        %649 = vmatprep.subr.mxu0 0.0
        %650 = vmatpush1.msra.mxu0 0.0
        %651 = vmatprep.subr.mxu0 0.0
        %652 = vmatpush1.msra.mxu0 0.0
        %653 = vmatprep.subr.mxu0 0.0
        %654 = vmatpush1.msra.mxu0 0.0
        %655 = vmatprep.subr.mxu0 0.0
        %656 = vmatpush1.msra.mxu0 0.0
        %657 = vmatprep.subr.mxu0 0.0
        %658 = vmatpush1.msra.mxu0 0.0
        %659 = vmatprep.subr.mxu0 0.0
        %660 = vmatpush1.msra.mxu0 0.0
        %661 = vmatprep.subr.mxu0 0.0
        %662 = vmatpush1.msra.mxu0 0.0
        %663 = vmatprep.mubr.f32.mxu0 0.0
        %664 = vmatmul.mubr.f32.gmra.mrb[0].mxu0 %v574
        %v665 = vpop.f32.mrb[0].mxu0
        %v666 = vadd.f32 %v597, %v665
        %v667 = vpop.f32.mrb[0].mxu0
        %668 = vmatprep.mubr.f32.mxu0 0.0
        %669 = vmatmul.mubr.f32.gmra.mrb[0].mxu0 %v575
        %v670 = vpop.f32.mrb[0].mxu0
        %v671 = vadd.f32 %v597, %v670
        %v672 = vpop.f32.mrb[0].mxu0
        %673 = vdwg.mxu0
        %v674 = vmax.f32 %v666, 0.0
        %v675 = vmax.f32 %v671, 0.0
        %v676 = vmax.f32 %v674, %v675
        %v677 = vrot.slane %v676, 4
        %v678 = vmax.f32 %v676, %v677
        %v679 = vrot.slane %v678, 2
        %v680 = vmax.f32 %v678, %v679
        %v681 = vrot.slane %v680, 1
        %v682 = vmax.f32 %v680, %v681
        %683 = vst.msk [vmem:[#allocation3 + $0x1] sm:$0x1] %vm390, %v682
        %684 = vmatprep.subr.mxu0 0.0
        %685 = vmatpush1.msra.mxu0 %v674
        %686 = vmatprep.subr.mxu0 0.0
        %687 = vmatpush1.msra.mxu0 %v675
        %688 = vmatprep.subr.mxu0 0.0
        %689 = vmatpush1.msra.mxu0 0.0
        %690 = vmatprep.subr.mxu0 0.0
        %691 = vmatpush1.msra.mxu0 0.0
        %692 = vmatprep.subr.mxu0 0.0
        %693 = vmatpush1.msra.mxu0 0.0
        %694 = vmatprep.subr.mxu0 0.0
        %695 = vmatpush1.msra.mxu0 0.0
        %696 = vmatprep.subr.mxu0 0.0
        %697 = vmatpush1.msra.mxu0 0.0
        %698 = vmatprep.subr.mxu0 0.0
        %699 = vmatpush1.msra.mxu0 0.0
        %700 = vmatprep.subr.mxu0 0.0
        %701 = vmatpush1.msra.mxu0 0.0
        %702 = vmatprep.subr.mxu0 0.0
        %703 = vmatpush1.msra.mxu0 0.0
        %704 = vmatprep.subr.mxu0 0.0
        %705 = vmatpush1.msra.mxu0 0.0
        %706 = vmatprep.subr.mxu0 0.0
        %707 = vmatpush1.msra.mxu0 0.0
        %708 = vmatprep.subr.mxu0 0.0
        %709 = vmatpush1.msra.mxu0 0.0
        %710 = vmatprep.subr.mxu0 0.0
        %711 = vmatpush1.msra.mxu0 0.0
        %712 = vmatprep.subr.mxu0 0.0
        %713 = vmatpush1.msra.mxu0 0.0
        %714 = vmatprep.subr.mxu0 0.0
        %715 = vmatpush1.msra.mxu0 0.0
        %716 = vmatprep.subr.mxu0 0.0
        %717 = vmatpush1.msra.mxu0 0.0
        %718 = vmatprep.subr.mxu0 0.0
        %719 = vmatpush1.msra.mxu0 0.0
        %720 = vmatprep.subr.mxu0 0.0
        %721 = vmatpush1.msra.mxu0 0.0
        %722 = vmatprep.subr.mxu0 0.0
        %723 = vmatpush1.msra.mxu0 0.0
        %724 = vmatprep.subr.mxu0 0.0
        %725 = vmatpush1.msra.mxu0 0.0
        %726 = vmatprep.subr.mxu0 0.0
        %727 = vmatpush1.msra.mxu0 0.0
        %728 = vmatprep.subr.mxu0 0.0
        %729 = vmatpush1.msra.mxu0 0.0
        %730 = vmatprep.subr.mxu0 0.0
        %731 = vmatpush1.msra.mxu0 0.0
        %732 = vmatprep.subr.mxu0 0.0
        %733 = vmatpush1.msra.mxu0 0.0
        %734 = vmatprep.subr.mxu0 0.0
        %735 = vmatpush1.msra.mxu0 0.0
        %736 = vmatprep.subr.mxu0 0.0
        %737 = vmatpush1.msra.mxu0 0.0
        %738 = vmatprep.subr.mxu0 0.0
        %739 = vmatpush1.msra.mxu0 0.0
        %740 = vmatprep.subr.mxu0 0.0
        %741 = vmatpush1.msra.mxu0 0.0
        %742 = vmatprep.subr.mxu0 0.0
        %743 = vmatpush1.msra.mxu0 0.0
        %744 = vmatprep.subr.mxu0 0.0
        %745 = vmatpush1.msra.mxu0 0.0
        %746 = vmatprep.subr.mxu0 0.0
        %747 = vmatpush1.msra.mxu0 0.0
        %748 = vmatprep.mubr.f32.mxu0 0.0
        %749 = vmatmul.mubr.f32.gmra.mrb[0].mxu0 %v394
        %v750 = vpop.f32.mrb[0].mxu0
        %v751 = vadd.f32 0.0, %v750
        %v752 = vpop.f32.mrb[0].mxu0
        %753 = vmatprep.mubr.f32.mxu0 0.0
        %754 = vmatmul.mubr.f32.gmra.mrb[0].mxu0 %v397
        %v755 = vpop.f32.mrb[0].mxu0
        %v756 = vadd.f32 0.0, %v755
        %v757 = vpop.f32.mrb[0].mxu0
        %758 = vdwg.mxu0
        %v759 = vadd.f32 %v674, %v751
        %v760 = vadd.f32 %v675, %v756
        %s761 = scalar_lea.vmem [#allocation4], 128
        %v762 = vld [vmem:[%s761] sm:$0xff]
        %v763 = vld [vmem:[%s761 + $0x8] sm:$0xff]
        %v764 = vld [vmem:[%s761 + $0x10] sm:$0xff]
        %v765 = vld [vmem:[%s761 + $0x18] sm:$0xff]
        %v766 = vld [vmem:[%s761 + $0x20] sm:$0xff]
        %v767 = vld [vmem:[%s761 + $0x28] sm:$0xff]
        %v768 = vld [vmem:[%s761 + $0x30] sm:$0xff]
        %v769 = vld [vmem:[%s761 + $0x38] sm:$0xff]
        %v770 = vld [vmem:[%s761 + $0x40] sm:$0xff]
        %v771 = vld [vmem:[%s761 + $0x48] sm:$0xff]
        %v772 = vld [vmem:[%s761 + $0x50] sm:$0xff]
        %v773 = vld [vmem:[%s761 + $0x58] sm:$0xff]
        %v774 = vld [vmem:[%s761 + $0x60] sm:$0xff]
        %v775 = vld [vmem:[%s761 + $0x68] sm:$0xff]
        %v776 = vld [vmem:[%s761 + $0x70] sm:$0xff]
        %v777 = vld [vmem:[%s761 + $0x78] sm:$0xff]
        %s778 = scalar_lea.vmem %s3, 1
        %v779 = vld [vmem:[%s778] sm:$0x1]
        %v781 = vlaneseq
        %v782 = vshrl.u32 %v781, 7
        %v783 = vsub.s32 0, %v782
        %v784 = vrot.slane %v779, %v783
        %786 = vmatprep.subr.mxu0 0.0
        %787 = vmatpush1.msra.mxu0 %v762
        %788 = vmatprep.subr.mxu0 0.0
        %789 = vmatpush1.msra.mxu0 %v763
        %790 = vmatprep.subr.mxu0 0.0
        %791 = vmatpush1.msra.mxu0 %v764
        %792 = vmatprep.subr.mxu0 0.0
        %793 = vmatpush1.msra.mxu0 %v765
        %794 = vmatprep.subr.mxu0 0.0
        %795 = vmatpush1.msra.mxu0 %v766
        %796 = vmatprep.subr.mxu0 0.0
        %797 = vmatpush1.msra.mxu0 %v767
        %798 = vmatprep.subr.mxu0 0.0
        %799 = vmatpush1.msra.mxu0 %v768
        %800 = vmatprep.subr.mxu0 0.0
        %801 = vmatpush1.msra.mxu0 %v769
        %802 = vmatprep.subr.mxu0 0.0
        %803 = vmatpush1.msra.mxu0 %v770
        %804 = vmatprep.subr.mxu0 0.0
        %805 = vmatpush1.msra.mxu0 %v771
        %806 = vmatprep.subr.mxu0 0.0
        %807 = vmatpush1.msra.mxu0 %v772
        %808 = vmatprep.subr.mxu0 0.0
        %809 = vmatpush1.msra.mxu0 %v773
        %810 = vmatprep.subr.mxu0 0.0
        %811 = vmatpush1.msra.mxu0 %v774
        %812 = vmatprep.subr.mxu0 0.0
        %813 = vmatpush1.msra.mxu0 %v775
        %814 = vmatprep.subr.mxu0 0.0
        %815 = vmatpush1.msra.mxu0 %v776
        %816 = vmatprep.subr.mxu0 0.0
        %817 = vmatpush1.msra.mxu0 %v777
        %818 = vmatprep.subr.mxu0 0.0
        %819 = vmatpush1.msra.mxu0 0.0
        %820 = vmatprep.subr.mxu0 0.0
        %821 = vmatpush1.msra.mxu0 0.0
        %822 = vmatprep.subr.mxu0 0.0
        %823 = vmatpush1.msra.mxu0 0.0
        %824 = vmatprep.subr.mxu0 0.0
        %825 = vmatpush1.msra.mxu0 0.0
        %826 = vmatprep.subr.mxu0 0.0
        %827 = vmatpush1.msra.mxu0 0.0
        %828 = vmatprep.subr.mxu0 0.0
        %829 = vmatpush1.msra.mxu0 0.0
        %830 = vmatprep.subr.mxu0 0.0
        %831 = vmatpush1.msra.mxu0 0.0
        %832 = vmatprep.subr.mxu0 0.0
        %833 = vmatpush1.msra.mxu0 0.0
        %834 = vmatprep.subr.mxu0 0.0
        %835 = vmatpush1.msra.mxu0 0.0
        %836 = vmatprep.subr.mxu0 0.0
        %837 = vmatpush1.msra.mxu0 0.0
        %838 = vmatprep.subr.mxu0 0.0
        %839 = vmatpush1.msra.mxu0 0.0
        %840 = vmatprep.subr.mxu0 0.0
        %841 = vmatpush1.msra.mxu0 0.0
        %842 = vmatprep.subr.mxu0 0.0
        %843 = vmatpush1.msra.mxu0 0.0
        %844 = vmatprep.subr.mxu0 0.0
        %845 = vmatpush1.msra.mxu0 0.0
        %846 = vmatprep.subr.mxu0 0.0
        %847 = vmatpush1.msra.mxu0 0.0
        %848 = vmatprep.subr.mxu0 0.0
        %849 = vmatpush1.msra.mxu0 0.0
        %850 = vmatprep.mubr.f32.mxu0 0.0
        %851 = vmatmul.mubr.f32.gmra.mrb[0].mxu0 %v759
        %v852 = vpop.f32.mrb[0].mxu0
        %v853 = vadd.f32 %v784, %v852
        %v854 = vpop.f32.mrb[0].mxu0
        %855 = vmatprep.mubr.f32.mxu0 0.0
        %856 = vmatmul.mubr.f32.gmra.mrb[0].mxu0 %v760
        %v857 = vpop.f32.mrb[0].mxu0
        %v858 = vadd.f32 %v784, %v857
        %v859 = vpop.f32.mrb[0].mxu0
        %860 = vdwg.mxu0
        %v861 = vmax.f32 %v853, 0.0
        %v862 = vmax.f32 %v858, 0.0
        %s863 = scalar_lea.vmem [#allocation7], 128
        %v864 = vld [vmem:[%s863] sm:$0xff]
        %v865 = vld [vmem:[%s863 + $0x8] sm:$0xff]
        %v866 = vld [vmem:[%s863 + $0x10] sm:$0xff]
        %v867 = vld [vmem:[%s863 + $0x18] sm:$0xff]
        %v868 = vld [vmem:[%s863 + $0x20] sm:$0xff]
        %v869 = vld [vmem:[%s863 + $0x28] sm:$0xff]
        %v870 = vld [vmem:[%s863 + $0x30] sm:$0xff]
        %v871 = vld [vmem:[%s863 + $0x38] sm:$0xff]
        %v872 = vld [vmem:[%s863 + $0x40] sm:$0xff]
        %v873 = vld [vmem:[%s863 + $0x48] sm:$0xff]
        %v874 = vld [vmem:[%s863 + $0x50] sm:$0xff]
        %v875 = vld [vmem:[%s863 + $0x58] sm:$0xff]
        %v876 = vld [vmem:[%s863 + $0x60] sm:$0xff]
        %v877 = vld [vmem:[%s863 + $0x68] sm:$0xff]
        %v878 = vld [vmem:[%s863 + $0x70] sm:$0xff]
        %v879 = vld [vmem:[%s863 + $0x78] sm:$0xff]
        %s880 = scalar_lea.vmem %s5, 1
        %v881 = vld [vmem:[%s880] sm:$0x1]
        %v883 = vlaneseq
        %v884 = vshrl.u32 %v883, 7
        %v885 = vsub.s32 0, %v884
        %v886 = vrot.slane %v881, %v885
        %888 = vmatprep.subr.mxu0 0.0
        %889 = vmatpush1.msra.mxu0 %v864
        %890 = vmatprep.subr.mxu0 0.0
        %891 = vmatpush1.msra.mxu0 %v865
        %892 = vmatprep.subr.mxu0 0.0
        %893 = vmatpush1.msra.mxu0 %v866
        %894 = vmatprep.subr.mxu0 0.0
        %895 = vmatpush1.msra.mxu0 %v867
        %896 = vmatprep.subr.mxu0 0.0
        %897 = vmatpush1.msra.mxu0 %v868
        %898 = vmatprep.subr.mxu0 0.0
        %899 = vmatpush1.msra.mxu0 %v869
        %900 = vmatprep.subr.mxu0 0.0
        %901 = vmatpush1.msra.mxu0 %v870
        %902 = vmatprep.subr.mxu0 0.0
        %903 = vmatpush1.msra.mxu0 %v871
        %904 = vmatprep.subr.mxu0 0.0
        %905 = vmatpush1.msra.mxu0 %v872
        %906 = vmatprep.subr.mxu0 0.0
        %907 = vmatpush1.msra.mxu0 %v873
        %908 = vmatprep.subr.mxu0 0.0
        %909 = vmatpush1.msra.mxu0 %v874
        %910 = vmatprep.subr.mxu0 0.0
        %911 = vmatpush1.msra.mxu0 %v875
        %912 = vmatprep.subr.mxu0 0.0
        %913 = vmatpush1.msra.mxu0 %v876
        %914 = vmatprep.subr.mxu0 0.0
        %915 = vmatpush1.msra.mxu0 %v877
        %916 = vmatprep.subr.mxu0 0.0
        %917 = vmatpush1.msra.mxu0 %v878
        %918 = vmatprep.subr.mxu0 0.0
        %919 = vmatpush1.msra.mxu0 %v879
        %920 = vmatprep.subr.mxu0 0.0
        %921 = vmatpush1.msra.mxu0 0.0
        %922 = vmatprep.subr.mxu0 0.0
        %923 = vmatpush1.msra.mxu0 0.0
        %924 = vmatprep.subr.mxu0 0.0
        %925 = vmatpush1.msra.mxu0 0.0
        %926 = vmatprep.subr.mxu0 0.0
        %927 = vmatpush1.msra.mxu0 0.0
        %928 = vmatprep.subr.mxu0 0.0
        %929 = vmatpush1.msra.mxu0 0.0
        %930 = vmatprep.subr.mxu0 0.0
        %931 = vmatpush1.msra.mxu0 0.0
        %932 = vmatprep.subr.mxu0 0.0
        %933 = vmatpush1.msra.mxu0 0.0
        %934 = vmatprep.subr.mxu0 0.0
        %935 = vmatpush1.msra.mxu0 0.0
        %936 = vmatprep.subr.mxu0 0.0
        %937 = vmatpush1.msra.mxu0 0.0
        %938 = vmatprep.subr.mxu0 0.0
        %939 = vmatpush1.msra.mxu0 0.0
        %940 = vmatprep.subr.mxu0 0.0
        %941 = vmatpush1.msra.mxu0 0.0
        %942 = vmatprep.subr.mxu0 0.0
        %943 = vmatpush1.msra.mxu0 0.0
        %944 = vmatprep.subr.mxu0 0.0
        %945 = vmatpush1.msra.mxu0 0.0
        %946 = vmatprep.subr.mxu0 0.0
        %947 = vmatpush1.msra.mxu0 0.0
        %948 = vmatprep.subr.mxu0 0.0
        %949 = vmatpush1.msra.mxu0 0.0
        %950 = vmatprep.subr.mxu0 0.0
        %951 = vmatpush1.msra.mxu0 0.0
        %952 = vmatprep.mubr.f32.mxu0 0.0
        %953 = vmatmul.mubr.f32.gmra.mrb[0].mxu0 %v861
        %v954 = vpop.f32.mrb[0].mxu0
        %v955 = vadd.f32 %v886, %v954
        %v956 = vpop.f32.mrb[0].mxu0
        %957 = vmatprep.mubr.f32.mxu0 0.0
        %958 = vmatmul.mubr.f32.gmra.mrb[0].mxu0 %v862
        %v959 = vpop.f32.mrb[0].mxu0
        %v960 = vadd.f32 %v886, %v959
        %v961 = vpop.f32.mrb[0].mxu0
        %962 = vdwg.mxu0
        %v963 = vmax.f32 %v955, 0.0
        %v964 = vmax.f32 %v960, 0.0
        %v965 = vmax.f32 %v963, %v964
        %v966 = vrot.slane %v965, 4
        %v967 = vmax.f32 %v965, %v966
        %v968 = vrot.slane %v967, 2
        %v969 = vmax.f32 %v967, %v968
        %v970 = vrot.slane %v969, 1
        %v971 = vmax.f32 %v969, %v970
        %972 = vst.msk [vmem:[#allocation3 + $0x2] sm:$0x1] %vm390, %v971
        %973 = vmatprep.subr.mxu0 0.0
        %974 = vmatpush1.msra.mxu0 %v963
        %975 = vmatprep.subr.mxu0 0.0
        %976 = vmatpush1.msra.mxu0 %v964
        %977 = vmatprep.subr.mxu0 0.0
        %978 = vmatpush1.msra.mxu0 0.0
        %979 = vmatprep.subr.mxu0 0.0
        %980 = vmatpush1.msra.mxu0 0.0
        %981 = vmatprep.subr.mxu0 0.0
        %982 = vmatpush1.msra.mxu0 0.0
        %983 = vmatprep.subr.mxu0 0.0
        %984 = vmatpush1.msra.mxu0 0.0
        %985 = vmatprep.subr.mxu0 0.0
        %986 = vmatpush1.msra.mxu0 0.0
        %987 = vmatprep.subr.mxu0 0.0
        %988 = vmatpush1.msra.mxu0 0.0
        %989 = vmatprep.subr.mxu0 0.0
        %990 = vmatpush1.msra.mxu0 0.0
        %991 = vmatprep.subr.mxu0 0.0
        %992 = vmatpush1.msra.mxu0 0.0
        %993 = vmatprep.subr.mxu0 0.0
        %994 = vmatpush1.msra.mxu0 0.0
        %995 = vmatprep.subr.mxu0 0.0
        %996 = vmatpush1.msra.mxu0 0.0
        %997 = vmatprep.subr.mxu0 0.0
        %998 = vmatpush1.msra.mxu0 0.0
        %999 = vmatprep.subr.mxu0 0.0
        %1000 = vmatpush1.msra.mxu0 0.0
        %1001 = vmatprep.subr.mxu0 0.0
        %1002 = vmatpush1.msra.mxu0 0.0
        %1003 = vmatprep.subr.mxu0 0.0
        %1004 = vmatpush1.msra.mxu0 0.0
        %1005 = vmatprep.subr.mxu0 0.0
        %1006 = vmatpush1.msra.mxu0 0.0
        %1007 = vmatprep.subr.mxu0 0.0
        %1008 = vmatpush1.msra.mxu0 0.0
        %1009 = vmatprep.subr.mxu0 0.0
        %1010 = vmatpush1.msra.mxu0 0.0
        %1011 = vmatprep.subr.mxu0 0.0
        %1012 = vmatpush1.msra.mxu0 0.0
        %1013 = vmatprep.subr.mxu0 0.0
        %1014 = vmatpush1.msra.mxu0 0.0
        %1015 = vmatprep.subr.mxu0 0.0
        %1016 = vmatpush1.msra.mxu0 0.0
        %1017 = vmatprep.subr.mxu0 0.0
        %1018 = vmatpush1.msra.mxu0 0.0
        %1019 = vmatprep.subr.mxu0 0.0
        %1020 = vmatpush1.msra.mxu0 0.0
        %1021 = vmatprep.subr.mxu0 0.0
        %1022 = vmatpush1.msra.mxu0 0.0
        %1023 = vmatprep.subr.mxu0 0.0
        %1024 = vmatpush1.msra.mxu0 0.0
        %1025 = vmatprep.subr.mxu0 0.0
        %1026 = vmatpush1.msra.mxu0 0.0
        %1027 = vmatprep.subr.mxu0 0.0
        %1028 = vmatpush1.msra.mxu0 0.0
        %1029 = vmatprep.subr.mxu0 0.0
        %1030 = vmatpush1.msra.mxu0 0.0
        %1031 = vmatprep.subr.mxu0 0.0
        %1032 = vmatpush1.msra.mxu0 0.0
        %1033 = vmatprep.subr.mxu0 0.0
        %1034 = vmatpush1.msra.mxu0 0.0
        %1035 = vmatprep.subr.mxu0 0.0
        %1036 = vmatpush1.msra.mxu0 0.0
        %1037 = vmatprep.mubr.f32.mxu0 0.0
        %1038 = vmatmul.mubr.f32.gmra.mrb[0].mxu0 %v394
        %v1039 = vpop.f32.mrb[0].mxu0
        %v1040 = vadd.f32 0.0, %v1039
        %v1041 = vpop.f32.mrb[0].mxu0
        %1042 = vmatprep.mubr.f32.mxu0 0.0
        %1043 = vmatmul.mubr.f32.gmra.mrb[0].mxu0 %v397
        %v1044 = vpop.f32.mrb[0].mxu0
        %v1045 = vadd.f32 0.0, %v1044
        %v1046 = vpop.f32.mrb[0].mxu0
        %1047 = vdwg.mxu0
        %v1048 = vadd.f32 %v963, %v1040
        %v1049 = vadd.f32 %v964, %v1045
        %s1050 = scalar_lea.vmem [#allocation4], 256
        %v1051 = vld [vmem:[%s1050] sm:$0xff]
        %v1052 = vld [vmem:[%s1050 + $0x8] sm:$0xff]
        %v1053 = vld [vmem:[%s1050 + $0x10] sm:$0xff]
        %v1054 = vld [vmem:[%s1050 + $0x18] sm:$0xff]
        %v1055 = vld [vmem:[%s1050 + $0x20] sm:$0xff]
        %v1056 = vld [vmem:[%s1050 + $0x28] sm:$0xff]
        %v1057 = vld [vmem:[%s1050 + $0x30] sm:$0xff]
        %v1058 = vld [vmem:[%s1050 + $0x38] sm:$0xff]
        %v1059 = vld [vmem:[%s1050 + $0x40] sm:$0xff]
        %v1060 = vld [vmem:[%s1050 + $0x48] sm:$0xff]
        %v1061 = vld [vmem:[%s1050 + $0x50] sm:$0xff]
        %v1062 = vld [vmem:[%s1050 + $0x58] sm:$0xff]
        %v1063 = vld [vmem:[%s1050 + $0x60] sm:$0xff]
        %v1064 = vld [vmem:[%s1050 + $0x68] sm:$0xff]
        %v1065 = vld [vmem:[%s1050 + $0x70] sm:$0xff]
        %v1066 = vld [vmem:[%s1050 + $0x78] sm:$0xff]
        %s1067 = scalar_lea.vmem %s3, 2
        %v1068 = vld [vmem:[%s1067] sm:$0x1]
        %v1070 = vlaneseq
        %v1071 = vshrl.u32 %v1070, 7
        %v1072 = vsub.s32 0, %v1071
        %v1073 = vrot.slane %v1068, %v1072
        %1075 = vmatprep.subr.mxu0 0.0
        %1076 = vmatpush1.msra.mxu0 %v1051
        %1077 = vmatprep.subr.mxu0 0.0
        %1078 = vmatpush1.msra.mxu0 %v1052
        %1079 = vmatprep.subr.mxu0 0.0
        %1080 = vmatpush1.msra.mxu0 %v1053
        %1081 = vmatprep.subr.mxu0 0.0
        %1082 = vmatpush1.msra.mxu0 %v1054
        %1083 = vmatprep.subr.mxu0 0.0
        %1084 = vmatpush1.msra.mxu0 %v1055
        %1085 = vmatprep.subr.mxu0 0.0
        %1086 = vmatpush1.msra.mxu0 %v1056
        %1087 = vmatprep.subr.mxu0 0.0
        %1088 = vmatpush1.msra.mxu0 %v1057
        %1089 = vmatprep.subr.mxu0 0.0
        %1090 = vmatpush1.msra.mxu0 %v1058
        %1091 = vmatprep.subr.mxu0 0.0
        %1092 = vmatpush1.msra.mxu0 %v1059
        %1093 = vmatprep.subr.mxu0 0.0
        %1094 = vmatpush1.msra.mxu0 %v1060
        %1095 = vmatprep.subr.mxu0 0.0
        %1096 = vmatpush1.msra.mxu0 %v1061
        %1097 = vmatprep.subr.mxu0 0.0
        %1098 = vmatpush1.msra.mxu0 %v1062
        %1099 = vmatprep.subr.mxu0 0.0
        %1100 = vmatpush1.msra.mxu0 %v1063
        %1101 = vmatprep.subr.mxu0 0.0
        %1102 = vmatpush1.msra.mxu0 %v1064
        %1103 = vmatprep.subr.mxu0 0.0
        %1104 = vmatpush1.msra.mxu0 %v1065
        %1105 = vmatprep.subr.mxu0 0.0
        %1106 = vmatpush1.msra.mxu0 %v1066
        %1107 = vmatprep.subr.mxu0 0.0
        %1108 = vmatpush1.msra.mxu0 0.0
        %1109 = vmatprep.subr.mxu0 0.0
        %1110 = vmatpush1.msra.mxu0 0.0
        %1111 = vmatprep.subr.mxu0 0.0
        %1112 = vmatpush1.msra.mxu0 0.0
        %1113 = vmatprep.subr.mxu0 0.0
        %1114 = vmatpush1.msra.mxu0 0.0
        %1115 = vmatprep.subr.mxu0 0.0
        %1116 = vmatpush1.msra.mxu0 0.0
        %1117 = vmatprep.subr.mxu0 0.0
        %1118 = vmatpush1.msra.mxu0 0.0
        %1119 = vmatprep.subr.mxu0 0.0
        %1120 = vmatpush1.msra.mxu0 0.0
        %1121 = vmatprep.subr.mxu0 0.0
        %1122 = vmatpush1.msra.mxu0 0.0
        %1123 = vmatprep.subr.mxu0 0.0
        %1124 = vmatpush1.msra.mxu0 0.0
        %1125 = vmatprep.subr.mxu0 0.0
        %1126 = vmatpush1.msra.mxu0 0.0
        %1127 = vmatprep.subr.mxu0 0.0
        %1128 = vmatpush1.msra.mxu0 0.0
        %1129 = vmatprep.subr.mxu0 0.0
        %1130 = vmatpush1.msra.mxu0 0.0
        %1131 = vmatprep.subr.mxu0 0.0
        %1132 = vmatpush1.msra.mxu0 0.0
        %1133 = vmatprep.subr.mxu0 0.0
        %1134 = vmatpush1.msra.mxu0 0.0
        %1135 = vmatprep.subr.mxu0 0.0
        %1136 = vmatpush1.msra.mxu0 0.0
        %1137 = vmatprep.subr.mxu0 0.0
        %1138 = vmatpush1.msra.mxu0 0.0
        %1139 = vmatprep.mubr.f32.mxu0 0.0
        %1140 = vmatmul.mubr.f32.gmra.mrb[0].mxu0 %v1048
        %v1141 = vpop.f32.mrb[0].mxu0
        %v1142 = vadd.f32 %v1073, %v1141
        %v1143 = vpop.f32.mrb[0].mxu0
        %1144 = vmatprep.mubr.f32.mxu0 0.0
        %1145 = vmatmul.mubr.f32.gmra.mrb[0].mxu0 %v1049
        %v1146 = vpop.f32.mrb[0].mxu0
        %v1147 = vadd.f32 %v1073, %v1146
        %v1148 = vpop.f32.mrb[0].mxu0
        %1149 = vdwg.mxu0
        %v1150 = vmax.f32 %v1142, 0.0
        %v1151 = vmax.f32 %v1147, 0.0
        %s1152 = scalar_lea.vmem [#allocation7], 256
        %v1153 = vld [vmem:[%s1152] sm:$0xff]
        %v1154 = vld [vmem:[%s1152 + $0x8] sm:$0xff]
        %v1155 = vld [vmem:[%s1152 + $0x10] sm:$0xff]
        %v1156 = vld [vmem:[%s1152 + $0x18] sm:$0xff]
        %v1157 = vld [vmem:[%s1152 + $0x20] sm:$0xff]
        %v1158 = vld [vmem:[%s1152 + $0x28] sm:$0xff]
        %v1159 = vld [vmem:[%s1152 + $0x30] sm:$0xff]
        %v1160 = vld [vmem:[%s1152 + $0x38] sm:$0xff]
        %v1161 = vld [vmem:[%s1152 + $0x40] sm:$0xff]
        %v1162 = vld [vmem:[%s1152 + $0x48] sm:$0xff]
        %v1163 = vld [vmem:[%s1152 + $0x50] sm:$0xff]
        %v1164 = vld [vmem:[%s1152 + $0x58] sm:$0xff]
        %v1165 = vld [vmem:[%s1152 + $0x60] sm:$0xff]
        %v1166 = vld [vmem:[%s1152 + $0x68] sm:$0xff]
        %v1167 = vld [vmem:[%s1152 + $0x70] sm:$0xff]
        %v1168 = vld [vmem:[%s1152 + $0x78] sm:$0xff]
        %s1169 = scalar_lea.vmem %s5, 2
        %v1170 = vld [vmem:[%s1169] sm:$0x1]
        %v1172 = vlaneseq
        %v1173 = vshrl.u32 %v1172, 7
        %v1174 = vsub.s32 0, %v1173
        %v1175 = vrot.slane %v1170, %v1174
        %1177 = vmatprep.subr.mxu0 0.0
        %1178 = vmatpush1.msra.mxu0 %v1153
        %1179 = vmatprep.subr.mxu0 0.0
        %1180 = vmatpush1.msra.mxu0 %v1154
        %1181 = vmatprep.subr.mxu0 0.0
        %1182 = vmatpush1.msra.mxu0 %v1155
        %1183 = vmatprep.subr.mxu0 0.0
        %1184 = vmatpush1.msra.mxu0 %v1156
        %1185 = vmatprep.subr.mxu0 0.0
        %1186 = vmatpush1.msra.mxu0 %v1157
        %1187 = vmatprep.subr.mxu0 0.0
        %1188 = vmatpush1.msra.mxu0 %v1158
        %1189 = vmatprep.subr.mxu0 0.0
        %1190 = vmatpush1.msra.mxu0 %v1159
        %1191 = vmatprep.subr.mxu0 0.0
        %1192 = vmatpush1.msra.mxu0 %v1160
        %1193 = vmatprep.subr.mxu0 0.0
        %1194 = vmatpush1.msra.mxu0 %v1161
        %1195 = vmatprep.subr.mxu0 0.0
        %1196 = vmatpush1.msra.mxu0 %v1162
        %1197 = vmatprep.subr.mxu0 0.0
        %1198 = vmatpush1.msra.mxu0 %v1163
        %1199 = vmatprep.subr.mxu0 0.0
        %1200 = vmatpush1.msra.mxu0 %v1164
        %1201 = vmatprep.subr.mxu0 0.0
        %1202 = vmatpush1.msra.mxu0 %v1165
        %1203 = vmatprep.subr.mxu0 0.0
        %1204 = vmatpush1.msra.mxu0 %v1166
        %1205 = vmatprep.subr.mxu0 0.0
        %1206 = vmatpush1.msra.mxu0 %v1167
        %1207 = vmatprep.subr.mxu0 0.0
        %1208 = vmatpush1.msra.mxu0 %v1168
        %1209 = vmatprep.subr.mxu0 0.0
        %1210 = vmatpush1.msra.mxu0 0.0
        %1211 = vmatprep.subr.mxu0 0.0
        %1212 = vmatpush1.msra.mxu0 0.0
        %1213 = vmatprep.subr.mxu0 0.0
        %1214 = vmatpush1.msra.mxu0 0.0
        %1215 = vmatprep.subr.mxu0 0.0
        %1216 = vmatpush1.msra.mxu0 0.0
        %1217 = vmatprep.subr.mxu0 0.0
        %1218 = vmatpush1.msra.mxu0 0.0
        %1219 = vmatprep.subr.mxu0 0.0
        %1220 = vmatpush1.msra.mxu0 0.0
        %1221 = vmatprep.subr.mxu0 0.0
        %1222 = vmatpush1.msra.mxu0 0.0
        %1223 = vmatprep.subr.mxu0 0.0
        %1224 = vmatpush1.msra.mxu0 0.0
        %1225 = vmatprep.subr.mxu0 0.0
        %1226 = vmatpush1.msra.mxu0 0.0
        %1227 = vmatprep.subr.mxu0 0.0
        %1228 = vmatpush1.msra.mxu0 0.0
        %1229 = vmatprep.subr.mxu0 0.0
        %1230 = vmatpush1.msra.mxu0 0.0
        %1231 = vmatprep.subr.mxu0 0.0
        %1232 = vmatpush1.msra.mxu0 0.0
        %1233 = vmatprep.subr.mxu0 0.0
        %1234 = vmatpush1.msra.mxu0 0.0
        %1235 = vmatprep.subr.mxu0 0.0
        %1236 = vmatpush1.msra.mxu0 0.0
        %1237 = vmatprep.subr.mxu0 0.0
        %1238 = vmatpush1.msra.mxu0 0.0
        %1239 = vmatprep.subr.mxu0 0.0
        %1240 = vmatpush1.msra.mxu0 0.0
        %1241 = vmatprep.mubr.f32.mxu0 0.0
        %1242 = vmatmul.mubr.f32.gmra.mrb[0].mxu0 %v1150
        %v1243 = vpop.f32.mrb[0].mxu0
        %v1244 = vadd.f32 %v1175, %v1243
        %v1245 = vpop.f32.mrb[0].mxu0
        %1246 = vmatprep.mubr.f32.mxu0 0.0
        %1247 = vmatmul.mubr.f32.gmra.mrb[0].mxu0 %v1151
        %v1248 = vpop.f32.mrb[0].mxu0
        %v1249 = vadd.f32 %v1175, %v1248
        %v1250 = vpop.f32.mrb[0].mxu0
        %1251 = vdwg.mxu0
        %v1252 = vmax.f32 %v1244, 0.0
        %v1253 = vmax.f32 %v1249, 0.0
        %v1254 = vmax.f32 %v1252, %v1253
        %v1255 = vrot.slane %v1254, 4
        %v1256 = vmax.f32 %v1254, %v1255
        %v1257 = vrot.slane %v1256, 2
        %v1258 = vmax.f32 %v1256, %v1257
        %v1259 = vrot.slane %v1258, 1
        %v1260 = vmax.f32 %v1258, %v1259
        %1261 = vst.msk [vmem:[#allocation3 + $0x3] sm:$0x1] %vm390, %v1260
        %1262 = vmatprep.subr.mxu0 0.0
        %1263 = vmatpush1.msra.mxu0 %v1252
        %1264 = vmatprep.subr.mxu0 0.0
        %1265 = vmatpush1.msra.mxu0 %v1253
        %1266 = vmatprep.subr.mxu0 0.0
        %1267 = vmatpush1.msra.mxu0 0.0
        %1268 = vmatprep.subr.mxu0 0.0
        %1269 = vmatpush1.msra.mxu0 0.0
        %1270 = vmatprep.subr.mxu0 0.0
        %1271 = vmatpush1.msra.mxu0 0.0
        %1272 = vmatprep.subr.mxu0 0.0
        %1273 = vmatpush1.msra.mxu0 0.0
        %1274 = vmatprep.subr.mxu0 0.0
        %1275 = vmatpush1.msra.mxu0 0.0
        %1276 = vmatprep.subr.mxu0 0.0
        %1277 = vmatpush1.msra.mxu0 0.0
        %1278 = vmatprep.subr.mxu0 0.0
        %1279 = vmatpush1.msra.mxu0 0.0
        %1280 = vmatprep.subr.mxu0 0.0
        %1281 = vmatpush1.msra.mxu0 0.0
        %1282 = vmatprep.subr.mxu0 0.0
        %1283 = vmatpush1.msra.mxu0 0.0
        %1284 = vmatprep.subr.mxu0 0.0
        %1285 = vmatpush1.msra.mxu0 0.0
        %1286 = vmatprep.subr.mxu0 0.0
        %1287 = vmatpush1.msra.mxu0 0.0
        %1288 = vmatprep.subr.mxu0 0.0
        %1289 = vmatpush1.msra.mxu0 0.0
        %1290 = vmatprep.subr.mxu0 0.0
        %1291 = vmatpush1.msra.mxu0 0.0
        %1292 = vmatprep.subr.mxu0 0.0
        %1293 = vmatpush1.msra.mxu0 0.0
        %1294 = vmatprep.subr.mxu0 0.0
        %1295 = vmatpush1.msra.mxu0 0.0
        %1296 = vmatprep.subr.mxu0 0.0
        %1297 = vmatpush1.msra.mxu0 0.0
        %1298 = vmatprep.subr.mxu0 0.0
        %1299 = vmatpush1.msra.mxu0 0.0
        %1300 = vmatprep.subr.mxu0 0.0
        %1301 = vmatpush1.msra.mxu0 0.0
        %1302 = vmatprep.subr.mxu0 0.0
        %1303 = vmatpush1.msra.mxu0 0.0
        %1304 = vmatprep.subr.mxu0 0.0
        %1305 = vmatpush1.msra.mxu0 0.0
        %1306 = vmatprep.subr.mxu0 0.0
        %1307 = vmatpush1.msra.mxu0 0.0
        %1308 = vmatprep.subr.mxu0 0.0
        %1309 = vmatpush1.msra.mxu0 0.0
        %1310 = vmatprep.subr.mxu0 0.0
        %1311 = vmatpush1.msra.mxu0 0.0
        %1312 = vmatprep.subr.mxu0 0.0
        %1313 = vmatpush1.msra.mxu0 0.0
        %1314 = vmatprep.subr.mxu0 0.0
        %1315 = vmatpush1.msra.mxu0 0.0
        %1316 = vmatprep.subr.mxu0 0.0
        %1317 = vmatpush1.msra.mxu0 0.0
        %1318 = vmatprep.subr.mxu0 0.0
        %1319 = vmatpush1.msra.mxu0 0.0
        %1320 = vmatprep.subr.mxu0 0.0
        %1321 = vmatpush1.msra.mxu0 0.0
        %1322 = vmatprep.subr.mxu0 0.0
        %1323 = vmatpush1.msra.mxu0 0.0
        %1324 = vmatprep.subr.mxu0 0.0
        %1325 = vmatpush1.msra.mxu0 0.0
        %1326 = vmatprep.mubr.f32.mxu0 0.0
        %1327 = vmatmul.mubr.f32.gmra.mrb[0].mxu0 %v394
        %v1328 = vpop.f32.mrb[0].mxu0
        %v1329 = vadd.f32 0.0, %v1328
        %v1330 = vpop.f32.mrb[0].mxu0
        %1331 = vmatprep.mubr.f32.mxu0 0.0
        %1332 = vmatmul.mubr.f32.gmra.mrb[0].mxu0 %v397
        %v1333 = vpop.f32.mrb[0].mxu0
        %v1334 = vadd.f32 0.0, %v1333
        %v1335 = vpop.f32.mrb[0].mxu0
        %1336 = vdwg.mxu0
        %v1337 = vadd.f32 %v1252, %v1329
        %v1338 = vadd.f32 %v1253, %v1334
        %s1339 = scalar_lea.vmem [#allocation4], 384
        %v1340 = vld [vmem:[%s1339] sm:$0xff]
        %v1341 = vld [vmem:[%s1339 + $0x8] sm:$0xff]
        %v1342 = vld [vmem:[%s1339 + $0x10] sm:$0xff]
        %v1343 = vld [vmem:[%s1339 + $0x18] sm:$0xff]
        %v1344 = vld [vmem:[%s1339 + $0x20] sm:$0xff]
        %v1345 = vld [vmem:[%s1339 + $0x28] sm:$0xff]
        %v1346 = vld [vmem:[%s1339 + $0x30] sm:$0xff]
        %v1347 = vld [vmem:[%s1339 + $0x38] sm:$0xff]
        %v1348 = vld [vmem:[%s1339 + $0x40] sm:$0xff]
        %v1349 = vld [vmem:[%s1339 + $0x48] sm:$0xff]
        %v1350 = vld [vmem:[%s1339 + $0x50] sm:$0xff]
        %v1351 = vld [vmem:[%s1339 + $0x58] sm:$0xff]
        %v1352 = vld [vmem:[%s1339 + $0x60] sm:$0xff]
        %v1353 = vld [vmem:[%s1339 + $0x68] sm:$0xff]
        %v1354 = vld [vmem:[%s1339 + $0x70] sm:$0xff]
        %v1355 = vld [vmem:[%s1339 + $0x78] sm:$0xff]
        %s1356 = scalar_lea.vmem %s3, 3
        %v1357 = vld [vmem:[%s1356] sm:$0x1]
        %v1359 = vlaneseq
        %v1360 = vshrl.u32 %v1359, 7
        %v1361 = vsub.s32 0, %v1360
        %v1362 = vrot.slane %v1357, %v1361
        %1364 = vmatprep.subr.mxu0 0.0
        %1365 = vmatpush1.msra.mxu0 %v1340
        %1366 = vmatprep.subr.mxu0 0.0
        %1367 = vmatpush1.msra.mxu0 %v1341
        %1368 = vmatprep.subr.mxu0 0.0
        %1369 = vmatpush1.msra.mxu0 %v1342
        %1370 = vmatprep.subr.mxu0 0.0
        %1371 = vmatpush1.msra.mxu0 %v1343
        %1372 = vmatprep.subr.mxu0 0.0
        %1373 = vmatpush1.msra.mxu0 %v1344
        %1374 = vmatprep.subr.mxu0 0.0
        %1375 = vmatpush1.msra.mxu0 %v1345
        %1376 = vmatprep.subr.mxu0 0.0
        %1377 = vmatpush1.msra.mxu0 %v1346
        %1378 = vmatprep.subr.mxu0 0.0
        %1379 = vmatpush1.msra.mxu0 %v1347
        %1380 = vmatprep.subr.mxu0 0.0
        %1381 = vmatpush1.msra.mxu0 %v1348
        %1382 = vmatprep.subr.mxu0 0.0
        %1383 = vmatpush1.msra.mxu0 %v1349
        %1384 = vmatprep.subr.mxu0 0.0
        %1385 = vmatpush1.msra.mxu0 %v1350
        %1386 = vmatprep.subr.mxu0 0.0
        %1387 = vmatpush1.msra.mxu0 %v1351
        %1388 = vmatprep.subr.mxu0 0.0
        %1389 = vmatpush1.msra.mxu0 %v1352
        %1390 = vmatprep.subr.mxu0 0.0
        %1391 = vmatpush1.msra.mxu0 %v1353
        %1392 = vmatprep.subr.mxu0 0.0
        %1393 = vmatpush1.msra.mxu0 %v1354
        %1394 = vmatprep.subr.mxu0 0.0
        %1395 = vmatpush1.msra.mxu0 %v1355
        %1396 = vmatprep.subr.mxu0 0.0
        %1397 = vmatpush1.msra.mxu0 0.0
        %1398 = vmatprep.subr.mxu0 0.0
        %1399 = vmatpush1.msra.mxu0 0.0
        %1400 = vmatprep.subr.mxu0 0.0
        %1401 = vmatpush1.msra.mxu0 0.0
        %1402 = vmatprep.subr.mxu0 0.0
        %1403 = vmatpush1.msra.mxu0 0.0
        %1404 = vmatprep.subr.mxu0 0.0
        %1405 = vmatpush1.msra.mxu0 0.0
        %1406 = vmatprep.subr.mxu0 0.0
        %1407 = vmatpush1.msra.mxu0 0.0
        %1408 = vmatprep.subr.mxu0 0.0
        %1409 = vmatpush1.msra.mxu0 0.0
        %1410 = vmatprep.subr.mxu0 0.0
        %1411 = vmatpush1.msra.mxu0 0.0
        %1412 = vmatprep.subr.mxu0 0.0
        %1413 = vmatpush1.msra.mxu0 0.0
        %1414 = vmatprep.subr.mxu0 0.0
        %1415 = vmatpush1.msra.mxu0 0.0
        %1416 = vmatprep.subr.mxu0 0.0
        %1417 = vmatpush1.msra.mxu0 0.0
        %1418 = vmatprep.subr.mxu0 0.0
        %1419 = vmatpush1.msra.mxu0 0.0
        %1420 = vmatprep.subr.mxu0 0.0
        %1421 = vmatpush1.msra.mxu0 0.0
        %1422 = vmatprep.subr.mxu0 0.0
        %1423 = vmatpush1.msra.mxu0 0.0
        %1424 = vmatprep.subr.mxu0 0.0
        %1425 = vmatpush1.msra.mxu0 0.0
        %1426 = vmatprep.subr.mxu0 0.0
        %1427 = vmatpush1.msra.mxu0 0.0
        %1428 = vmatprep.mubr.f32.mxu0 0.0
        %1429 = vmatmul.mubr.f32.gmra.mrb[0].mxu0 %v1337
        %v1430 = vpop.f32.mrb[0].mxu0
        %v1431 = vadd.f32 %v1362, %v1430
        %v1432 = vpop.f32.mrb[0].mxu0
        %1433 = vmatprep.mubr.f32.mxu0 0.0
        %1434 = vmatmul.mubr.f32.gmra.mrb[0].mxu0 %v1338
        %v1435 = vpop.f32.mrb[0].mxu0
        %v1436 = vadd.f32 %v1362, %v1435
        %v1437 = vpop.f32.mrb[0].mxu0
        %1438 = vdwg.mxu0
        %v1439 = vmax.f32 %v1431, 0.0
        %v1440 = vmax.f32 %v1436, 0.0
        %s1441 = scalar_lea.vmem [#allocation7], 384
        %v1442 = vld [vmem:[%s1441] sm:$0xff]
        %v1443 = vld [vmem:[%s1441 + $0x8] sm:$0xff]
        %v1444 = vld [vmem:[%s1441 + $0x10] sm:$0xff]
        %v1445 = vld [vmem:[%s1441 + $0x18] sm:$0xff]
        %v1446 = vld [vmem:[%s1441 + $0x20] sm:$0xff]
        %v1447 = vld [vmem:[%s1441 + $0x28] sm:$0xff]
        %v1448 = vld [vmem:[%s1441 + $0x30] sm:$0xff]
        %v1449 = vld [vmem:[%s1441 + $0x38] sm:$0xff]
        %v1450 = vld [vmem:[%s1441 + $0x40] sm:$0xff]
        %v1451 = vld [vmem:[%s1441 + $0x48] sm:$0xff]
        %v1452 = vld [vmem:[%s1441 + $0x50] sm:$0xff]
        %v1453 = vld [vmem:[%s1441 + $0x58] sm:$0xff]
        %v1454 = vld [vmem:[%s1441 + $0x60] sm:$0xff]
        %v1455 = vld [vmem:[%s1441 + $0x68] sm:$0xff]
        %v1456 = vld [vmem:[%s1441 + $0x70] sm:$0xff]
        %v1457 = vld [vmem:[%s1441 + $0x78] sm:$0xff]
        %s1458 = scalar_lea.vmem %s5, 3
        %v1459 = vld [vmem:[%s1458] sm:$0x1]
        %v1461 = vlaneseq
        %v1462 = vshrl.u32 %v1461, 7
        %v1463 = vsub.s32 0, %v1462
        %v1464 = vrot.slane %v1459, %v1463
        %1466 = vmatprep.subr.mxu0 0.0
        %1467 = vmatpush1.msra.mxu0 %v1442
        %1468 = vmatprep.subr.mxu0 0.0
        %1469 = vmatpush1.msra.mxu0 %v1443
        %1470 = vmatprep.subr.mxu0 0.0
        %1471 = vmatpush1.msra.mxu0 %v1444
        %1472 = vmatprep.subr.mxu0 0.0
        %1473 = vmatpush1.msra.mxu0 %v1445
        %1474 = vmatprep.subr.mxu0 0.0
        %1475 = vmatpush1.msra.mxu0 %v1446
        %1476 = vmatprep.subr.mxu0 0.0
        %1477 = vmatpush1.msra.mxu0 %v1447
        %1478 = vmatprep.subr.mxu0 0.0
        %1479 = vmatpush1.msra.mxu0 %v1448
        %1480 = vmatprep.subr.mxu0 0.0
        %1481 = vmatpush1.msra.mxu0 %v1449
        %1482 = vmatprep.subr.mxu0 0.0
        %1483 = vmatpush1.msra.mxu0 %v1450
        %1484 = vmatprep.subr.mxu0 0.0
        %1485 = vmatpush1.msra.mxu0 %v1451
        %1486 = vmatprep.subr.mxu0 0.0
        %1487 = vmatpush1.msra.mxu0 %v1452
        %1488 = vmatprep.subr.mxu0 0.0
        %1489 = vmatpush1.msra.mxu0 %v1453
        %1490 = vmatprep.subr.mxu0 0.0
        %1491 = vmatpush1.msra.mxu0 %v1454
        %1492 = vmatprep.subr.mxu0 0.0
        %1493 = vmatpush1.msra.mxu0 %v1455
        %1494 = vmatprep.subr.mxu0 0.0
        %1495 = vmatpush1.msra.mxu0 %v1456
        %1496 = vmatprep.subr.mxu0 0.0
        %1497 = vmatpush1.msra.mxu0 %v1457
        %1498 = vmatprep.subr.mxu0 0.0
        %1499 = vmatpush1.msra.mxu0 0.0
        %1500 = vmatprep.subr.mxu0 0.0
        %1501 = vmatpush1.msra.mxu0 0.0
        %1502 = vmatprep.subr.mxu0 0.0
        %1503 = vmatpush1.msra.mxu0 0.0
        %1504 = vmatprep.subr.mxu0 0.0
        %1505 = vmatpush1.msra.mxu0 0.0
        %1506 = vmatprep.subr.mxu0 0.0
        %1507 = vmatpush1.msra.mxu0 0.0
        %1508 = vmatprep.subr.mxu0 0.0
        %1509 = vmatpush1.msra.mxu0 0.0
        %1510 = vmatprep.subr.mxu0 0.0
        %1511 = vmatpush1.msra.mxu0 0.0
        %1512 = vmatprep.subr.mxu0 0.0
        %1513 = vmatpush1.msra.mxu0 0.0
        %1514 = vmatprep.subr.mxu0 0.0
        %1515 = vmatpush1.msra.mxu0 0.0
        %1516 = vmatprep.subr.mxu0 0.0
        %1517 = vmatpush1.msra.mxu0 0.0
        %1518 = vmatprep.subr.mxu0 0.0
        %1519 = vmatpush1.msra.mxu0 0.0
        %1520 = vmatprep.subr.mxu0 0.0
        %1521 = vmatpush1.msra.mxu0 0.0
        %1522 = vmatprep.subr.mxu0 0.0
        %1523 = vmatpush1.msra.mxu0 0.0
        %1524 = vmatprep.subr.mxu0 0.0
        %1525 = vmatpush1.msra.mxu0 0.0
        %1526 = vmatprep.subr.mxu0 0.0
        %1527 = vmatpush1.msra.mxu0 0.0
        %1528 = vmatprep.subr.mxu0 0.0
        %1529 = vmatpush1.msra.mxu0 0.0
        %1530 = vmatprep.mubr.f32.mxu0 0.0
        %1531 = vmatmul.mubr.f32.gmra.mrb[0].mxu0 %v1439
        %v1532 = vpop.f32.mrb[0].mxu0
        %v1533 = vadd.f32 %v1464, %v1532
        %v1534 = vpop.f32.mrb[0].mxu0
        %1535 = vmatprep.mubr.f32.mxu0 0.0
        %1536 = vmatmul.mubr.f32.gmra.mrb[0].mxu0 %v1440
        %v1537 = vpop.f32.mrb[0].mxu0
        %v1538 = vadd.f32 %v1464, %v1537
        %v1539 = vpop.f32.mrb[0].mxu0
        %1540 = vdwg.mxu0
        %v1541 = vmax.f32 %v1533, 0.0
        %v1542 = vmax.f32 %v1538, 0.0
        %v1543 = vmax.f32 %v1541, %v1542
        %v1544 = vrot.slane %v1543, 4
        %v1545 = vmax.f32 %v1543, %v1544
        %v1546 = vrot.slane %v1545, 2
        %v1547 = vmax.f32 %v1545, %v1546
        %v1548 = vrot.slane %v1547, 1
        %v1549 = vmax.f32 %v1547, %v1548
        %1550 = vst.msk [vmem:[#allocation3 + $0x4] sm:$0x1] %vm390, %v1549
        %v1551 = vld [vmem:[#allocation3] sm:$0x1f]
        %v1552 = vld [vmem:[#allocation9] sm:$0xff]
        %v1553 = vld [vmem:[#allocation9 + $0x8] sm:$0xff]
        %v1554 = vld [vmem:[#allocation9 + $0x10] sm:$0xff]
        %v1555 = vld [vmem:[#allocation9 + $0x18] sm:$0xff]
        %v1556 = vld [vmem:[#allocation9 + $0x20] sm:$0xff]
        %v1557 = vld [vmem:[#allocation9 + $0x28] sm:$0xff]
        %v1558 = vld [vmem:[#allocation9 + $0x30] sm:$0xff]
        %v1559 = vld [vmem:[#allocation9 + $0x38] sm:$0xff]
        %v1560 = vld [vmem:[#allocation9 + $0x40] sm:$0xff]
        %v1561 = vld [vmem:[#allocation9 + $0x48] sm:$0xff]
        %v1562 = vld [vmem:[#allocation9 + $0x50] sm:$0xff]
        %v1563 = vld [vmem:[#allocation9 + $0x58] sm:$0xff]
        %v1564 = vld [vmem:[#allocation9 + $0x60] sm:$0xff]
        %v1565 = vld [vmem:[#allocation9 + $0x68] sm:$0xff]
        %v1566 = vld [vmem:[#allocation9 + $0x70] sm:$0xff]
        %v1567 = vld [vmem:[#allocation9 + $0x78] sm:$0xff]
        %v1568 = vld [vmem:[#allocation9 + $0x80] sm:$0xff]
        %v1569 = vld [vmem:[#allocation9 + $0x88] sm:$0xff]
        %v1570 = vld [vmem:[#allocation9 + $0x90] sm:$0xff]
        %v1571 = vld [vmem:[#allocation9 + $0x98] sm:$0xff]
        %v1572 = vld [vmem:[#allocation9 + $0xa0] sm:$0xff]
        %v1573 = vld [vmem:[#allocation9 + $0xa8] sm:$0xff]
        %v1574 = vld [vmem:[#allocation9 + $0xb0] sm:$0xff]
        %v1575 = vld [vmem:[#allocation9 + $0xb8] sm:$0xff]
        %v1576 = vld [vmem:[#allocation9 + $0xc0] sm:$0xff]
        %v1577 = vld [vmem:[#allocation9 + $0xc8] sm:$0xff]
        %v1578 = vld [vmem:[#allocation9 + $0xd0] sm:$0xff]
        %v1579 = vld [vmem:[#allocation9 + $0xd8] sm:$0xff]
        %v1580 = vld [vmem:[#allocation9 + $0xe0] sm:$0xff]
        %v1581 = vld [vmem:[#allocation9 + $0xe8] sm:$0xff]
        %v1582 = vld [vmem:[#allocation9 + $0xf0] sm:$0xff]
        %v1583 = vld [vmem:[#allocation9 + $0xf8] sm:$0xff]
        %v1584 = vld [vmem:[#allocation9 + $0x100] sm:$0xff]
        %v1585 = vld [vmem:[#allocation9 + $0x108] sm:$0xff]
        %v1586 = vld [vmem:[#allocation9 + $0x110] sm:$0xff]
        %v1587 = vld [vmem:[#allocation9 + $0x118] sm:$0xff]
        %v1588 = vld [vmem:[#allocation9 + $0x120] sm:$0xff]
        %v1589 = vld [vmem:[#allocation9 + $0x128] sm:$0xff]
        %v1590 = vld [vmem:[#allocation9 + $0x130] sm:$0xff]
        %v1591 = vld [vmem:[#allocation9 + $0x138] sm:$0xff]
        %v1592 = vld [vmem:[#allocation9 + $0x140] sm:$0xff]
        %v1593 = vld [vmem:[#allocation9 + $0x148] sm:$0xff]
        %v1594 = vld [vmem:[#allocation9 + $0x150] sm:$0xff]
        %v1595 = vld [vmem:[#allocation9 + $0x158] sm:$0xff]
        %v1596 = vld [vmem:[#allocation9 + $0x160] sm:$0xff]
        %v1597 = vld [vmem:[#allocation9 + $0x168] sm:$0xff]
        %v1598 = vld [vmem:[#allocation9 + $0x170] sm:$0xff]
        %v1599 = vld [vmem:[#allocation9 + $0x178] sm:$0xff]
        %v1600 = vld [vmem:[#allocation9 + $0x180] sm:$0xff]
        %v1601 = vld [vmem:[#allocation9 + $0x188] sm:$0xff]
        %v1602 = vld [vmem:[#allocation9 + $0x190] sm:$0xff]
        %v1603 = vld [vmem:[#allocation9 + $0x198] sm:$0xff]
        %v1604 = vld [vmem:[#allocation9 + $0x1a0] sm:$0xff]
        %v1605 = vld [vmem:[#allocation9 + $0x1a8] sm:$0xff]
        %v1606 = vld [vmem:[#allocation9 + $0x1b0] sm:$0xff]
        %v1607 = vld [vmem:[#allocation9 + $0x1b8] sm:$0xff]
        %v1608 = vld [vmem:[#allocation9 + $0x1c0] sm:$0xff]
        %v1609 = vld [vmem:[#allocation9 + $0x1c8] sm:$0xff]
        %v1610 = vld [vmem:[#allocation9 + $0x1d0] sm:$0xff]
        %v1611 = vld [vmem:[#allocation9 + $0x1d8] sm:$0xff]
        %v1612 = vld [vmem:[#allocation9 + $0x1e0] sm:$0xff]
        %v1613 = vld [vmem:[#allocation9 + $0x1e8] sm:$0xff]
        %v1614 = vld [vmem:[#allocation9 + $0x1f0] sm:$0xff]
        %v1615 = vld [vmem:[#allocation9 + $0x1f8] sm:$0xff]
        %v1616 = vld [vmem:[#allocation9 + $0x200] sm:$0xff]
        %v1617 = vld [vmem:[#allocation9 + $0x208] sm:$0xff]
        %v1618 = vld [vmem:[#allocation9 + $0x210] sm:$0xff]
        %v1619 = vld [vmem:[#allocation9 + $0x218] sm:$0xff]
        %v1620 = vld [vmem:[#allocation9 + $0x220] sm:$0xff]
        %v1621 = vld [vmem:[#allocation9 + $0x228] sm:$0xff]
        %v1622 = vld [vmem:[#allocation9 + $0x230] sm:$0xff]
        %v1623 = vld [vmem:[#allocation9 + $0x238] sm:$0xff]
        %v1624 = vld [vmem:[#allocation9 + $0x240] sm:$0xff]
        %v1625 = vld [vmem:[#allocation9 + $0x248] sm:$0xff]
        %v1626 = vld [vmem:[#allocation9 + $0x250] sm:$0xff]
        %v1627 = vld [vmem:[#allocation9 + $0x258] sm:$0xff]
        %v1628 = vld [vmem:[#allocation9 + $0x260] sm:$0xff]
        %v1629 = vld [vmem:[#allocation9 + $0x268] sm:$0xff]
        %v1630 = vld [vmem:[#allocation9 + $0x270] sm:$0xff]
        %v1631 = vld [vmem:[#allocation9 + $0x278] sm:$0xff]
        %v1632 = vld [vmem:[%s7] sm:$0x1]
        %v1634 = vlaneseq
        %v1635 = vshrl.u32 %v1634, 7
        %v1636 = vsub.s32 0, %v1635
        %v1637 = vrot.slane %v1551, %v1636
        %v1638 = vlaneseq
        %v1639 = vshrl.u32 %v1638, 7
        %v1640 = vsub.s32 1, %v1639
        %v1641 = vrot.slane %v1551, %v1640
        %v1642 = vlaneseq
        %v1643 = vshrl.u32 %v1642, 7
        %v1644 = vsub.s32 2, %v1643
        %v1645 = vrot.slane %v1551, %v1644
        %v1646 = vlaneseq
        %v1647 = vshrl.u32 %v1646, 7
        %v1648 = vsub.s32 3, %v1647
        %v1649 = vrot.slane %v1551, %v1648
        %v1650 = vlaneseq
        %v1651 = vshrl.u32 %v1650, 7
        %v1652 = vsub.s32 4, %v1651
        %v1653 = vrot.slane %v1551, %v1652
        %1659 = vmatprep.subr.mxu0 0.0
        %1660 = vmatpush1.msra.mxu0 %v1552
        %1661 = vmatprep.subr.mxu0 0.0
        %1662 = vmatpush1.msra.mxu0 %v1553
        %1663 = vmatprep.subr.mxu0 0.0
        %1664 = vmatpush1.msra.mxu0 %v1554
        %1665 = vmatprep.subr.mxu0 0.0
        %1666 = vmatpush1.msra.mxu0 %v1555
        %1667 = vmatprep.subr.mxu0 0.0
        %1668 = vmatpush1.msra.mxu0 %v1556
        %1669 = vmatprep.subr.mxu0 0.0
        %1670 = vmatpush1.msra.mxu0 %v1557
        %1671 = vmatprep.subr.mxu0 0.0
        %1672 = vmatpush1.msra.mxu0 %v1558
        %1673 = vmatprep.subr.mxu0 0.0
        %1674 = vmatpush1.msra.mxu0 %v1559
        %1675 = vmatprep.subr.mxu0 0.0
        %1676 = vmatpush1.msra.mxu0 %v1560
        %1677 = vmatprep.subr.mxu0 0.0
        %1678 = vmatpush1.msra.mxu0 %v1561
        %1679 = vmatprep.subr.mxu0 0.0
        %1680 = vmatpush1.msra.mxu0 %v1562
        %1681 = vmatprep.subr.mxu0 0.0
        %1682 = vmatpush1.msra.mxu0 %v1563
        %1683 = vmatprep.subr.mxu0 0.0
        %1684 = vmatpush1.msra.mxu0 %v1564
        %1685 = vmatprep.subr.mxu0 0.0
        %1686 = vmatpush1.msra.mxu0 %v1565
        %1687 = vmatprep.subr.mxu0 0.0
        %1688 = vmatpush1.msra.mxu0 %v1566
        %1689 = vmatprep.subr.mxu0 0.0
        %1690 = vmatpush1.msra.mxu0 %v1567
        %1691 = vmatprep.subr.mxu0 0.0
        %1692 = vmatpush1.msra.mxu0 %v1568
        %1693 = vmatprep.subr.mxu0 0.0
        %1694 = vmatpush1.msra.mxu0 %v1569
        %1695 = vmatprep.subr.mxu0 0.0
        %1696 = vmatpush1.msra.mxu0 %v1570
        %1697 = vmatprep.subr.mxu0 0.0
        %1698 = vmatpush1.msra.mxu0 %v1571
        %1699 = vmatprep.subr.mxu0 0.0
        %1700 = vmatpush1.msra.mxu0 %v1572
        %1701 = vmatprep.subr.mxu0 0.0
        %1702 = vmatpush1.msra.mxu0 %v1573
        %1703 = vmatprep.subr.mxu0 0.0
        %1704 = vmatpush1.msra.mxu0 %v1574
        %1705 = vmatprep.subr.mxu0 0.0
        %1706 = vmatpush1.msra.mxu0 %v1575
        %1707 = vmatprep.subr.mxu0 0.0
        %1708 = vmatpush1.msra.mxu0 %v1576
        %1709 = vmatprep.subr.mxu0 0.0
        %1710 = vmatpush1.msra.mxu0 %v1577
        %1711 = vmatprep.subr.mxu0 0.0
        %1712 = vmatpush1.msra.mxu0 %v1578
        %1713 = vmatprep.subr.mxu0 0.0
        %1714 = vmatpush1.msra.mxu0 %v1579
        %1715 = vmatprep.subr.mxu0 0.0
        %1716 = vmatpush1.msra.mxu0 %v1580
        %1717 = vmatprep.subr.mxu0 0.0
        %1718 = vmatpush1.msra.mxu0 %v1581
        %1719 = vmatprep.subr.mxu0 0.0
        %1720 = vmatpush1.msra.mxu0 %v1582
        %1721 = vmatprep.subr.mxu0 0.0
        %1722 = vmatpush1.msra.mxu0 %v1583
        %1723 = vmatprep.mubr.f32.mxu0 %v1641
        %1724 = vmatmul.mubr.f32.gmra.mrb[0].mxu0 %v1637
        %v1725 = vpop.f32.mrb[0].mxu0
        %v1726 = vadd.f32 %v1632, %v1725
        %v1727 = vpop.f32.mrb[0].mxu0
        %1728 = vdwg.mxu0
        %1729 = vmatprep.subr.mxu0 0.0
        %1730 = vmatpush1.msra.mxu0 %v1584
        %1731 = vmatprep.subr.mxu0 0.0
        %1732 = vmatpush1.msra.mxu0 %v1585
        %1733 = vmatprep.subr.mxu0 0.0
        %1734 = vmatpush1.msra.mxu0 %v1586
        %1735 = vmatprep.subr.mxu0 0.0
        %1736 = vmatpush1.msra.mxu0 %v1587
        %1737 = vmatprep.subr.mxu0 0.0
        %1738 = vmatpush1.msra.mxu0 %v1588
        %1739 = vmatprep.subr.mxu0 0.0
        %1740 = vmatpush1.msra.mxu0 %v1589
        %1741 = vmatprep.subr.mxu0 0.0
        %1742 = vmatpush1.msra.mxu0 %v1590
        %1743 = vmatprep.subr.mxu0 0.0
        %1744 = vmatpush1.msra.mxu0 %v1591
        %1745 = vmatprep.subr.mxu0 0.0
        %1746 = vmatpush1.msra.mxu0 %v1592
        %1747 = vmatprep.subr.mxu0 0.0
        %1748 = vmatpush1.msra.mxu0 %v1593
        %1749 = vmatprep.subr.mxu0 0.0
        %1750 = vmatpush1.msra.mxu0 %v1594
        %1751 = vmatprep.subr.mxu0 0.0
        %1752 = vmatpush1.msra.mxu0 %v1595
        %1753 = vmatprep.subr.mxu0 0.0
        %1754 = vmatpush1.msra.mxu0 %v1596
        %1755 = vmatprep.subr.mxu0 0.0
        %1756 = vmatpush1.msra.mxu0 %v1597
        %1757 = vmatprep.subr.mxu0 0.0
        %1758 = vmatpush1.msra.mxu0 %v1598
        %1759 = vmatprep.subr.mxu0 0.0
        %1760 = vmatpush1.msra.mxu0 %v1599
        %1761 = vmatprep.subr.mxu0 0.0
        %1762 = vmatpush1.msra.mxu0 %v1600
        %1763 = vmatprep.subr.mxu0 0.0
        %1764 = vmatpush1.msra.mxu0 %v1601
        %1765 = vmatprep.subr.mxu0 0.0
        %1766 = vmatpush1.msra.mxu0 %v1602
        %1767 = vmatprep.subr.mxu0 0.0
        %1768 = vmatpush1.msra.mxu0 %v1603
        %1769 = vmatprep.subr.mxu0 0.0
        %1770 = vmatpush1.msra.mxu0 %v1604
        %1771 = vmatprep.subr.mxu0 0.0
        %1772 = vmatpush1.msra.mxu0 %v1605
        %1773 = vmatprep.subr.mxu0 0.0
        %1774 = vmatpush1.msra.mxu0 %v1606
        %1775 = vmatprep.subr.mxu0 0.0
        %1776 = vmatpush1.msra.mxu0 %v1607
        %1777 = vmatprep.subr.mxu0 0.0
        %1778 = vmatpush1.msra.mxu0 %v1608
        %1779 = vmatprep.subr.mxu0 0.0
        %1780 = vmatpush1.msra.mxu0 %v1609
        %1781 = vmatprep.subr.mxu0 0.0
        %1782 = vmatpush1.msra.mxu0 %v1610
        %1783 = vmatprep.subr.mxu0 0.0
        %1784 = vmatpush1.msra.mxu0 %v1611
        %1785 = vmatprep.subr.mxu0 0.0
        %1786 = vmatpush1.msra.mxu0 %v1612
        %1787 = vmatprep.subr.mxu0 0.0
        %1788 = vmatpush1.msra.mxu0 %v1613
        %1789 = vmatprep.subr.mxu0 0.0
        %1790 = vmatpush1.msra.mxu0 %v1614
        %1791 = vmatprep.subr.mxu0 0.0
        %1792 = vmatpush1.msra.mxu0 %v1615
        %1793 = vmatprep.mubr.f32.mxu0 %v1649
        %1794 = vmatmul.mubr.f32.gmra.mrb[0].mxu0 %v1645
        %v1795 = vpop.f32.mrb[0].mxu0
        %v1796 = vadd.f32 %v1726, %v1795
        %v1797 = vpop.f32.mrb[0].mxu0
        %1798 = vdwg.mxu0
        %1799 = vmatprep.subr.mxu0 0.0
        %1800 = vmatpush1.msra.mxu0 %v1616
        %1801 = vmatprep.subr.mxu0 0.0
        %1802 = vmatpush1.msra.mxu0 %v1617
        %1803 = vmatprep.subr.mxu0 0.0
        %1804 = vmatpush1.msra.mxu0 %v1618
        %1805 = vmatprep.subr.mxu0 0.0
        %1806 = vmatpush1.msra.mxu0 %v1619
        %1807 = vmatprep.subr.mxu0 0.0
        %1808 = vmatpush1.msra.mxu0 %v1620
        %1809 = vmatprep.subr.mxu0 0.0
        %1810 = vmatpush1.msra.mxu0 %v1621
        %1811 = vmatprep.subr.mxu0 0.0
        %1812 = vmatpush1.msra.mxu0 %v1622
        %1813 = vmatprep.subr.mxu0 0.0
        %1814 = vmatpush1.msra.mxu0 %v1623
        %1815 = vmatprep.subr.mxu0 0.0
        %1816 = vmatpush1.msra.mxu0 %v1624
        %1817 = vmatprep.subr.mxu0 0.0
        %1818 = vmatpush1.msra.mxu0 %v1625
        %1819 = vmatprep.subr.mxu0 0.0
        %1820 = vmatpush1.msra.mxu0 %v1626
        %1821 = vmatprep.subr.mxu0 0.0
        %1822 = vmatpush1.msra.mxu0 %v1627
        %1823 = vmatprep.subr.mxu0 0.0
        %1824 = vmatpush1.msra.mxu0 %v1628
        %1825 = vmatprep.subr.mxu0 0.0
        %1826 = vmatpush1.msra.mxu0 %v1629
        %1827 = vmatprep.subr.mxu0 0.0
        %1828 = vmatpush1.msra.mxu0 %v1630
        %1829 = vmatprep.subr.mxu0 0.0
        %1830 = vmatpush1.msra.mxu0 %v1631
        %1831 = vmatprep.subr.mxu0 0.0
        %1832 = vmatpush1.msra.mxu0 0.0
        %1833 = vmatprep.subr.mxu0 0.0
        %1834 = vmatpush1.msra.mxu0 0.0
        %1835 = vmatprep.subr.mxu0 0.0
        %1836 = vmatpush1.msra.mxu0 0.0
        %1837 = vmatprep.subr.mxu0 0.0
        %1838 = vmatpush1.msra.mxu0 0.0
        %1839 = vmatprep.subr.mxu0 0.0
        %1840 = vmatpush1.msra.mxu0 0.0
        %1841 = vmatprep.subr.mxu0 0.0
        %1842 = vmatpush1.msra.mxu0 0.0
        %1843 = vmatprep.subr.mxu0 0.0
        %1844 = vmatpush1.msra.mxu0 0.0
        %1845 = vmatprep.subr.mxu0 0.0
        %1846 = vmatpush1.msra.mxu0 0.0
        %1847 = vmatprep.subr.mxu0 0.0
        %1848 = vmatpush1.msra.mxu0 0.0
        %1849 = vmatprep.subr.mxu0 0.0
        %1850 = vmatpush1.msra.mxu0 0.0
        %1851 = vmatprep.subr.mxu0 0.0
        %1852 = vmatpush1.msra.mxu0 0.0
        %1853 = vmatprep.subr.mxu0 0.0
        %1854 = vmatpush1.msra.mxu0 0.0
        %1855 = vmatprep.subr.mxu0 0.0
        %1856 = vmatpush1.msra.mxu0 0.0
        %1857 = vmatprep.subr.mxu0 0.0
        %1858 = vmatpush1.msra.mxu0 0.0
        %1859 = vmatprep.subr.mxu0 0.0
        %1860 = vmatpush1.msra.mxu0 0.0
        %1861 = vmatprep.subr.mxu0 0.0
        %1862 = vmatpush1.msra.mxu0 0.0
        %1863 = vmatprep.mubr.f32.mxu0 0.0
        %1864 = vmatmul.mubr.f32.gmra.mrb[0].mxu0 %v1653
        %v1865 = vpop.f32.mrb[0].mxu0
        %v1866 = vadd.f32 %v1796, %v1865
        %v1867 = vpop.f32.mrb[0].mxu0
        %1868 = vdwg.mxu0
        %1869 = vst [vmem:[%s356] sm:$0x1] %v1866
        %s1870 = sand.u32 %s210, 1
        %s1871 = scalar_lea.sflag [#allocation6], %s1870
        %s1872 = sand.u32 %s210, 1
        %s1873 = scalar_lea.vmem [#allocation10], %s1872
        // Predicated region
        $region65: #{tpu_custom_call.1} parent=51 // pred_check
          %p1874 = pneg %p220
        $region66: #{tpu_custom_call.1} parent=51 // pred_check_branch
          %1876 = sbr.rel (%p1874) target = $region68
        $region67: #{tpu_custom_call.1} parent=51 // pred_region
          %s1878 = ssub.s32 16, 16
          %1879 = vsyncadd %s1871, %s1878
          %s1880 = smul.addr %s24, 16
          %s1881 = scalar_lea.hbm %s8, %s1880
          %s1883 = sshll.u32 %s1873, 4
          %s1884 = int_to_ptr.vmem [resolvable:$true] %s1883
          %1886 = dma.vmem_to_hbm [thread:$0]  %s1884, 16, %s1881, %s1871
        $region68: #{tpu_custom_call.1} parent=51 // pred_fallthru
          _
      $region52: #{tpu_custom_call.1} parent=5 // pred_fallthru
        _
      %p1887 = scmp.le.s32.totalorder 2, %s19
      // Predicated region
      $region69: #{tpu_custom_call.1} parent=5 // pred_check
        %p1888 = pneg %p1887
      $region70: #{tpu_custom_call.1} parent=5 // pred_check_branch
        %1890 = sbr.rel (%p1888) target = $region72
      $region71: #{tpu_custom_call.1} parent=5 // pred_region
        %s1891 = ssub.s32 %s19, 2
        // Predicated region
        $region73: #{tpu_custom_call.1} parent=71 // pred_check
          %p1892 = pneg %p226
        $region74: #{tpu_custom_call.1} parent=71 // pred_check_branch
          %1894 = sbr.rel (%p1892) target = $region76
        $region75: #{tpu_custom_call.1} parent=71 // pred_region
          %s1895 = sand.u32 %s211, 1
          %s1896 = scalar_lea.sflag [#allocation6], %s1895
          %s1897 = sand.u32 %s211, 1
          %s1898 = scalar_lea.vmem [#allocation10], %s1897
          %1899 = dma.done %s1896, 16
        $region76: #{tpu_custom_call.1} parent=71 // pred_fallthru
          _
      $region72: #{tpu_custom_call.1} parent=5 // pred_fallthru
        _
    $region6: #{tpu_custom_call.1} parent=1 // loop_footer
      %s23 = sadd.s32 1, %s19
    $region7: #{tpu_custom_call.1} parent=1 // loop_footer_branch
      %18 = sbr.rel target = $region3
    $region8: #{tpu_custom_call.1} parent=1 // loop_exit
      _
    %1900 = vsyncpa [#allocation5], 1
    %s1901 = scalar_lea.sflag [#allocation5], 1
    %1902 = vsyncpa %s1901, 1
    %1903 = vsyncpa [#allocation8], 1
    %1904 = vsyncpa [#allocation6], 1
    %s1905 = scalar_lea.sflag [#allocation6], 1
    %1906 = vsyncpa %s1905, 1

</llo_original>
